<compile_context>
chip_gen: v6e
topology: v6e:2x2x1
jax: 0.10.0
libtpu: 0.0.40
codegen_flags: <defaults>
</compile_context>

<pallas_src>
import functools

import jax
import jax.numpy as jnp
from jax.experimental import pallas as pl
from jax.experimental.pallas import tpu as pltpu


def _round_up(x, m):
    return (x + m - 1) // m * m


def _mfb_fusion_kernel(text_ref, image_ref,
                       wt_ref, bt_ref, wi_ref, bi_ref,
                       out_ref, *, fact_dim, inv_fact):
    # Activations for this batch tile (loaded once, reused across factors).
    x_t = text_ref[...]        # (tm, Kt_pad)  compute dtype (bf16 by default)
    x_i = image_ref[...]       # (tm, Ki_pad)

    acc = jnp.zeros(out_ref.shape, jnp.float32)
    # fact_dim is a small static int -> unrolled loop; lets the scheduler
    # interleave the text/image matmuls across factors.
    for f in range(fact_dim):
        t_proj = jnp.dot(x_t, wt_ref[f],
                         preferred_element_type=jnp.float32) + bt_ref[f]
        i_proj = jnp.dot(x_i, wi_ref[f],
                         preferred_element_type=jnp.float32) + bi_ref[f]
        acc = acc + t_proj * i_proj

    mean = acc * inv_fact                                   # mean over factors
    # F.normalize(p=2, dim=1): x / max(||x||, 1e-12).  Zero-padded N columns
    # are exactly zero so they do not perturb the norm.
    sumsq = jnp.sum(mean * mean, axis=1, keepdims=True)
    inv = jax.lax.rsqrt(jnp.maximum(sumsq, 1e-24))          # EUP rsqrt
    out_ref[...] = (mean * inv).astype(out_ref.dtype)


def prepare_mfb_params(wt, bt, wi, bi, *, fact_dim, output_dim,
                       compute_dtype=jnp.bfloat16, align=256):
    """One-time weight repack (do NOT call per forward).

    wt: (text_dim, fact_dim*output_dim), wi: (image_dim, fact_dim*output_dim),
    bt/bi: (1, fact_dim*output_dim).  Layout matches `x @ W + b`
    (== PyTorch `x @ W.T + b` with W stored transposed).
    Returns packed (fact, K_pad, N_pad) weight slabs (compute_dtype) and
    (fact, 1, N_pad) f32 bias slabs, zero padded.
    """
    Kt, proj_dim = wt.shape
    Ki, proj_dim_i = wi.shape
    assert proj_dim == fact_dim * output_dim and proj_dim_i == proj_dim

    n_pad = _round_up(output_dim, align)
    kt_pad = _round_up(Kt, align)
    ki_pad = _round_up(Ki, align)

    def pack_w(w, k, k_pad):
        w3 = w.reshape(k, fact_dim, output_dim).transpose(1, 0, 2)
        w3 = jnp.pad(w3, ((0, 0), (0, k_pad - k), (0, n_pad - output_dim)))
        return w3.astype(compute_dtype)

    def pack_b(b):
        b3 = b.reshape(1, fact_dim, output_dim).transpose(1, 0, 2)
        b3 = jnp.pad(b3, ((0, 0), (0, 0), (0, n_pad - output_dim)))
        return b3.astype(jnp.float32)

    return dict(
        wt=pack_w(wt, Kt, kt_pad), bt=pack_b(bt),
        wi=pack_w(wi, Ki, ki_pad), bi=pack_b(bi),
        fact_dim=fact_dim, output_dim=output_dim,
        kt=Kt, ki=Ki, kt_pad=kt_pad, ki_pad=ki_pad, n_pad=n_pad,
        compute_dtype=compute_dtype,
    )


def mfb_fusion(text_embeddings, image_embeddings, params, *, batch_tile=256):
    B, Kt = text_embeddings.shape
    B2, Ki = image_embeddings.shape
    assert B == B2 and Kt == params["kt"] and Ki == params["ki"]

    fact_dim = params["fact_dim"]
    output_dim = params["output_dim"]
    kt_pad, ki_pad, n_pad = params["kt_pad"], params["ki_pad"], params["n_pad"]
    cdt = params["compute_dtype"]

    # Batch tile: multiple of 8 sublanes; prefer >= 2 tiles when there is
    # enough work so the "parallel" axis shards across v7x's 2 TensorCores.
    tm = min(batch_tile, _round_up(B, 8))
    if B >= 16 and _round_up(B, tm) // tm < 2:
        tm = _round_up((B + 1) // 2, 8)
    b_pad = _round_up(B, tm)

    txt = jnp.pad(text_embeddings,
                  ((0, b_pad - B), (0, kt_pad - Kt))).astype(cdt)
    img = jnp.pad(image_embeddings,
                  ((0, b_pad - B), (0, ki_pad - Ki))).astype(cdt)

    # Explicit VMEM budget: weights/biases resident once, activations and
    # output double-buffered by the pipeline; 2x margin + headroom, clamped.
    itemsize = jnp.dtype(cdt).itemsize
    vmem_bytes = (
        fact_dim * (kt_pad + ki_pad) * n_pad * itemsize   # weight slabs
        + 2 * fact_dim * n_pad * 4                        # bias slabs (f32)
        + 2 * tm * (kt_pad + ki_pad) * itemsize           # activations (x2 buf)
        + 2 * tm * n_pad * 4                              # output (x2 buf)
    )
    vmem_limit = min(max(int(vmem_bytes * 2) + (4 << 20), 32 << 20), 96 << 20)

    kernel = functools.partial(_mfb_fusion_kernel,
                               fact_dim=fact_dim, inv_fact=1.0 / fact_dim)

    out_padded = pl.pallas_call(
        kernel,
        out_shape=jax.ShapeDtypeStruct((b_pad, n_pad), jnp.float32),
        grid=(b_pad // tm,),
        in_specs=[
            # Activations: tiled over batch.
            pl.BlockSpec((tm, kt_pad), lambda i: (i, 0)),
            pl.BlockSpec((tm, ki_pad), lambda i: (i, 0)),
            # Weights / biases: constant block index -> DMA'd once, then
            # VMEM-resident across all batch tiles (no redundant streaming).
            pl.BlockSpec((fact_dim, kt_pad, n_pad), lambda i: (0, 0, 0)),
            pl.BlockSpec((fact_dim, 1, n_pad), lambda i: (0, 0, 0)),
            pl.BlockSpec((fact_dim, ki_pad, n_pad), lambda i: (0, 0, 0)),
            pl.BlockSpec((fact_dim, 1, n_pad), lambda i: (0, 0, 0)),
        ],
        out_specs=pl.BlockSpec((tm, n_pad), lambda i: (i, 0)),
        compiler_params=pltpu.CompilerParams(
            dimension_semantics=("parallel",),
            vmem_limit_bytes=vmem_limit),
    )(txt, img, params["wt"], params["bt"], params["wi"], params["bi"])

    return out_padded[:B, :output_dim]


def mfb_fusion_reference(text_embeddings, image_embeddings,
                         wt, bt, wi, bi, *, fact_dim, output_dim):
    image_proj = image_embeddings @ wi + bi
    text_proj = text_embeddings @ wt + bt
    mfb = (image_proj * text_proj).reshape(-1, fact_dim, output_dim).mean(axis=1)
    norm = jnp.maximum(jnp.linalg.norm(mfb, axis=1, keepdims=True), 1e-12)
    return mfb / norm


if __name__ == "__main__":
    # Small shapes consistent with the module.
    batch = 2
    image_embed_dim = 32
    text_embed_dim = 24
    fact_dim = 4
    output_dim = 16
    proj_dim = fact_dim * output_dim

    key = jax.random.PRNGKey(0)
    k_txt, k_img, k_wt, k_bt, k_wi, k_bi = jax.random.split(key, 6)

    text_embeddings = jax.random.normal(k_txt, (batch, text_embed_dim), jnp.float32)
    image_embeddings = jax.random.normal(k_img, (batch, image_embed_dim), jnp.float32)

    # Synthetic parameters stored as (in, out); bias as (1, out) — i.e. the
    # transpose of nn.Linear's weight so that x @ W + b == x @ W_torch.T + b.
    wt = jax.random.normal(k_wt, (text_embed_dim, proj_dim), jnp.float32) * 0.05
    bt = jax.random.normal(k_bt, (1, proj_dim), jnp.float32) * 0.05
    wi = jax.random.normal(k_wi, (image_embed_dim, proj_dim), jnp.float32) * 0.05
    bi = jax.random.normal(k_bi, (1, proj_dim), jnp.float32) * 0.05

    # One-time parameter repack (bf16 operands, f32 biases).
    params = prepare_mfb_params(wt, bt, wi, bi,
                                fact_dim=fact_dim, output_dim=output_dim,
                                compute_dtype=jnp.bfloat16)

    out = mfb_fusion(text_embeddings, image_embeddings, params)
    out = jax.block_until_ready(out)

    ref = mfb_fusion_reference(text_embeddings, image_embeddings, wt, bt, wi, bi,
                               fact_dim=fact_dim, output_dim=output_dim)
    assert out.shape == (batch, output_dim)
    # bf16 matmul operands (f32 accumulate) -> loosened tolerance vs f32 ref.
    assert jnp.allclose(out, ref, atol=2e-2, rtol=2e-2), "mismatch vs reference"

    print("KERNEL_OK")
</pallas_src>

<mosaic_0001>
module attributes {stable_mosaic.version = 11 : i64} {
  func.func @_mfb_fusion_kernel(%arg0: i32, %arg1: memref<8x256xbf16, #tpu.memory_space<vmem>>, %arg2: memref<8x256xbf16, #tpu.memory_space<vmem>>, %arg3: memref<4x256x256xbf16, #tpu.memory_space<vmem>>, %arg4: memref<4x1x256xf32, #tpu.memory_space<vmem>>, %arg5: memref<4x256x256xbf16, #tpu.memory_space<vmem>>, %arg6: memref<4x1x256xf32, #tpu.memory_space<vmem>>, %arg7: memref<8x256xf32, #tpu.memory_space<vmem>>) attributes {dimension_semantics = [#tpu.dimension_semantics<parallel>], iteration_bounds = array<i64: 1>, scalar_prefetch = 0 : i64, scratch_operands = 0 : i64, tpu.core_type = #tpu.core_type<tc>, window_params = [{transform_indices = @transform_0, window_bounds = array<i64: 8, 256>}, {transform_indices = @transform_1, window_bounds = array<i64: 8, 256>}, {pipeline_mode = #tpu.pipeline_mode<synchronous>, transform_indices = @transform_2, window_bounds = array<i64: 4, 256, 256>}, {pipeline_mode = #tpu.pipeline_mode<synchronous>, transform_indices = @transform_3, window_bounds = array<i64: 4, 1, 256>}, {pipeline_mode = #tpu.pipeline_mode<synchronous>, transform_indices = @transform_4, window_bounds = array<i64: 4, 256, 256>}, {pipeline_mode = #tpu.pipeline_mode<synchronous>, transform_indices = @transform_5, window_bounds = array<i64: 4, 1, 256>}, {transform_indices = @transform_6, window_bounds = array<i64: 8, 256>}]} {
    %c0 = arith.constant 0 : index
    %c0_0 = arith.constant 0 : index
    %0 = vector.load %arg1[%c0, %c0_0] : memref<8x256xbf16, #tpu.memory_space<vmem>>, vector<8x256xbf16>
    %c0_1 = arith.constant 0 : index
    %c0_2 = arith.constant 0 : index
    %1 = vector.load %arg2[%c0_1, %c0_2] : memref<8x256xbf16, #tpu.memory_space<vmem>>, vector<8x256xbf16>
    %cst = arith.constant 0.000000e+00 : f32
    %2 = vector.broadcast %cst : f32 to vector<8x256xf32>
    %c0_3 = arith.constant 0 : index
    %c0_4 = arith.constant 0 : index
    %c0_5 = arith.constant 0 : index
    %3 = vector.load %arg3[%c0_3, %c0_4, %c0_5] : memref<4x256x256xbf16, #tpu.memory_space<vmem>>, vector<1x256x256xbf16>
    %4 = vector.shape_cast %3 : vector<1x256x256xbf16> to vector<256x256xbf16>
    %cst_6 = arith.constant dense<0.000000e+00> : vector<8x256xf32>
    %5 = tpu.matmul %0, %4, %cst_6 {dimension_numbers = #tpu.dot_dimension_numbers<[1], [0], [0], [1], [0, 0, 1, 1], [], []>} : vector<8x256xbf16>, vector<256x256xbf16>, vector<8x256xf32> -> vector<8x256xf32>
    %c0_7 = arith.constant 0 : index
    %c0_8 = arith.constant 0 : index
    %c0_9 = arith.constant 0 : index
    %6 = vector.load %arg4[%c0_7, %c0_8, %c0_9] : memref<4x1x256xf32, #tpu.memory_space<vmem>>, vector<1x1x256xf32>
    %7 = vector.shape_cast %6 : vector<1x1x256xf32> to vector<1x256xf32>
    %8 = vector.broadcast %7 : vector<1x256xf32> to vector<8x256xf32>
    %9 = arith.addf %5, %8 : vector<8x256xf32>
    %c0_10 = arith.constant 0 : index
    %c0_11 = arith.constant 0 : index
    %c0_12 = arith.constant 0 : index
    %10 = vector.load %arg5[%c0_10, %c0_11, %c0_12] : memref<4x256x256xbf16, #tpu.memory_space<vmem>>, vector<1x256x256xbf16>
    %11 = vector.shape_cast %10 : vector<1x256x256xbf16> to vector<256x256xbf16>
    %cst_13 = arith.constant dense<0.000000e+00> : vector<8x256xf32>
    %12 = tpu.matmul %1, %11, %cst_13 {dimension_numbers = #tpu.dot_dimension_numbers<[1], [0], [0], [1], [0, 0, 1, 1], [], []>} : vector<8x256xbf16>, vector<256x256xbf16>, vector<8x256xf32> -> vector<8x256xf32>
    %c0_14 = arith.constant 0 : index
    %c0_15 = arith.constant 0 : index
    %c0_16 = arith.constant 0 : index
    %13 = vector.load %arg6[%c0_14, %c0_15, %c0_16] : memref<4x1x256xf32, #tpu.memory_space<vmem>>, vector<1x1x256xf32>
    %14 = vector.shape_cast %13 : vector<1x1x256xf32> to vector<1x256xf32>
    %15 = vector.broadcast %14 : vector<1x256xf32> to vector<8x256xf32>
    %16 = arith.addf %12, %15 : vector<8x256xf32>
    %17 = arith.mulf %9, %16 : vector<8x256xf32>
    %18 = arith.addf %2, %17 : vector<8x256xf32>
    %c1 = arith.constant 1 : index
    %c0_17 = arith.constant 0 : index
    %c0_18 = arith.constant 0 : index
    %19 = vector.load %arg3[%c1, %c0_17, %c0_18] : memref<4x256x256xbf16, #tpu.memory_space<vmem>>, vector<1x256x256xbf16>
    %20 = vector.shape_cast %19 : vector<1x256x256xbf16> to vector<256x256xbf16>
    %cst_19 = arith.constant dense<0.000000e+00> : vector<8x256xf32>
    %21 = tpu.matmul %0, %20, %cst_19 {dimension_numbers = #tpu.dot_dimension_numbers<[1], [0], [0], [1], [0, 0, 1, 1], [], []>} : vector<8x256xbf16>, vector<256x256xbf16>, vector<8x256xf32> -> vector<8x256xf32>
    %c1_20 = arith.constant 1 : index
    %c0_21 = arith.constant 0 : index
    %c0_22 = arith.constant 0 : index
    %22 = vector.load %arg4[%c1_20, %c0_21, %c0_22] : memref<4x1x256xf32, #tpu.memory_space<vmem>>, vector<1x1x256xf32>
    %23 = vector.shape_cast %22 : vector<1x1x256xf32> to vector<1x256xf32>
    %24 = vector.broadcast %23 : vector<1x256xf32> to vector<8x256xf32>
    %25 = arith.addf %21, %24 : vector<8x256xf32>
    %c1_23 = arith.constant 1 : index
    %c0_24 = arith.constant 0 : index
    %c0_25 = arith.constant 0 : index
    %26 = vector.load %arg5[%c1_23, %c0_24, %c0_25] : memref<4x256x256xbf16, #tpu.memory_space<vmem>>, vector<1x256x256xbf16>
    %27 = vector.shape_cast %26 : vector<1x256x256xbf16> to vector<256x256xbf16>
    %cst_26 = arith.constant dense<0.000000e+00> : vector<8x256xf32>
    %28 = tpu.matmul %1, %27, %cst_26 {dimension_numbers = #tpu.dot_dimension_numbers<[1], [0], [0], [1], [0, 0, 1, 1], [], []>} : vector<8x256xbf16>, vector<256x256xbf16>, vector<8x256xf32> -> vector<8x256xf32>
    %c1_27 = arith.constant 1 : index
    %c0_28 = arith.constant 0 : index
    %c0_29 = arith.constant 0 : index
    %29 = vector.load %arg6[%c1_27, %c0_28, %c0_29] : memref<4x1x256xf32, #tpu.memory_space<vmem>>, vector<1x1x256xf32>
    %30 = vector.shape_cast %29 : vector<1x1x256xf32> to vector<1x256xf32>
    %31 = vector.broadcast %30 : vector<1x256xf32> to vector<8x256xf32>
    %32 = arith.addf %28, %31 : vector<8x256xf32>
    %33 = arith.mulf %25, %32 : vector<8x256xf32>
    %34 = arith.addf %18, %33 : vector<8x256xf32>
    %c2 = arith.constant 2 : index
    %c0_30 = arith.constant 0 : index
    %c0_31 = arith.constant 0 : index
    %35 = vector.load %arg3[%c2, %c0_30, %c0_31] : memref<4x256x256xbf16, #tpu.memory_space<vmem>>, vector<1x256x256xbf16>
    %36 = vector.shape_cast %35 : vector<1x256x256xbf16> to vector<256x256xbf16>
    %cst_32 = arith.constant dense<0.000000e+00> : vector<8x256xf32>
    %37 = tpu.matmul %0, %36, %cst_32 {dimension_numbers = #tpu.dot_dimension_numbers<[1], [0], [0], [1], [0, 0, 1, 1], [], []>} : vector<8x256xbf16>, vector<256x256xbf16>, vector<8x256xf32> -> vector<8x256xf32>
    %c2_33 = arith.constant 2 : index
    %c0_34 = arith.constant 0 : index
    %c0_35 = arith.constant 0 : index
    %38 = vector.load %arg4[%c2_33, %c0_34, %c0_35] : memref<4x1x256xf32, #tpu.memory_space<vmem>>, vector<1x1x256xf32>
    %39 = vector.shape_cast %38 : vector<1x1x256xf32> to vector<1x256xf32>
    %40 = vector.broadcast %39 : vector<1x256xf32> to vector<8x256xf32>
    %41 = arith.addf %37, %40 : vector<8x256xf32>
    %c2_36 = arith.constant 2 : index
    %c0_37 = arith.constant 0 : index
    %c0_38 = arith.constant 0 : index
    %42 = vector.load %arg5[%c2_36, %c0_37, %c0_38] : memref<4x256x256xbf16, #tpu.memory_space<vmem>>, vector<1x256x256xbf16>
    %43 = vector.shape_cast %42 : vector<1x256x256xbf16> to vector<256x256xbf16>
    %cst_39 = arith.constant dense<0.000000e+00> : vector<8x256xf32>
    %44 = tpu.matmul %1, %43, %cst_39 {dimension_numbers = #tpu.dot_dimension_numbers<[1], [0], [0], [1], [0, 0, 1, 1], [], []>} : vector<8x256xbf16>, vector<256x256xbf16>, vector<8x256xf32> -> vector<8x256xf32>
    %c2_40 = arith.constant 2 : index
    %c0_41 = arith.constant 0 : index
    %c0_42 = arith.constant 0 : index
    %45 = vector.load %arg6[%c2_40, %c0_41, %c0_42] : memref<4x1x256xf32, #tpu.memory_space<vmem>>, vector<1x1x256xf32>
    %46 = vector.shape_cast %45 : vector<1x1x256xf32> to vector<1x256xf32>
    %47 = vector.broadcast %46 : vector<1x256xf32> to vector<8x256xf32>
    %48 = arith.addf %44, %47 : vector<8x256xf32>
    %49 = arith.mulf %41, %48 : vector<8x256xf32>
    %50 = arith.addf %34, %49 : vector<8x256xf32>
    %c3 = arith.constant 3 : index
    %c0_43 = arith.constant 0 : index
    %c0_44 = arith.constant 0 : index
    %51 = vector.load %arg3[%c3, %c0_43, %c0_44] : memref<4x256x256xbf16, #tpu.memory_space<vmem>>, vector<1x256x256xbf16>
    %52 = vector.shape_cast %51 : vector<1x256x256xbf16> to vector<256x256xbf16>
    %cst_45 = arith.constant dense<0.000000e+00> : vector<8x256xf32>
    %53 = tpu.matmul %0, %52, %cst_45 {dimension_numbers = #tpu.dot_dimension_numbers<[1], [0], [0], [1], [0, 0, 1, 1], [], []>} : vector<8x256xbf16>, vector<256x256xbf16>, vector<8x256xf32> -> vector<8x256xf32>
    %c3_46 = arith.constant 3 : index
    %c0_47 = arith.constant 0 : index
    %c0_48 = arith.constant 0 : index
    %54 = vector.load %arg4[%c3_46, %c0_47, %c0_48] : memref<4x1x256xf32, #tpu.memory_space<vmem>>, vector<1x1x256xf32>
    %55 = vector.shape_cast %54 : vector<1x1x256xf32> to vector<1x256xf32>
    %56 = vector.broadcast %55 : vector<1x256xf32> to vector<8x256xf32>
    %57 = arith.addf %53, %56 : vector<8x256xf32>
    %c3_49 = arith.constant 3 : index
    %c0_50 = arith.constant 0 : index
    %c0_51 = arith.constant 0 : index
    %58 = vector.load %arg5[%c3_49, %c0_50, %c0_51] : memref<4x256x256xbf16, #tpu.memory_space<vmem>>, vector<1x256x256xbf16>
    %59 = vector.shape_cast %58 : vector<1x256x256xbf16> to vector<256x256xbf16>
    %cst_52 = arith.constant dense<0.000000e+00> : vector<8x256xf32>
    %60 = tpu.matmul %1, %59, %cst_52 {dimension_numbers = #tpu.dot_dimension_numbers<[1], [0], [0], [1], [0, 0, 1, 1], [], []>} : vector<8x256xbf16>, vector<256x256xbf16>, vector<8x256xf32> -> vector<8x256xf32>
    %c3_53 = arith.constant 3 : index
    %c0_54 = arith.constant 0 : index
    %c0_55 = arith.constant 0 : index
    %61 = vector.load %arg6[%c3_53, %c0_54, %c0_55] : memref<4x1x256xf32, #tpu.memory_space<vmem>>, vector<1x1x256xf32>
    %62 = vector.shape_cast %61 : vector<1x1x256xf32> to vector<1x256xf32>
    %63 = vector.broadcast %62 : vector<1x256xf32> to vector<8x256xf32>
    %64 = arith.addf %60, %63 : vector<8x256xf32>
    %65 = arith.mulf %57, %64 : vector<8x256xf32>
    %66 = arith.addf %50, %65 : vector<8x256xf32>
    %cst_56 = arith.constant 2.500000e-01 : f32
    %67 = vector.broadcast %cst_56 : f32 to vector<8x256xf32>
    %68 = arith.mulf %66, %67 : vector<8x256xf32>
    %69 = arith.mulf %68, %68 : vector<8x256xf32>
    %cst_57 = arith.constant dense<0.000000e+00> : vector<8xf32>
    %70 = vector.multi_reduction <add>, %69, %cst_57 [1] : vector<8x256xf32> to vector<8xf32>
    %71 = vector.shape_cast %70 : vector<8xf32> to vector<8x1xf32>
    %cst_58 = arith.constant 1.000000e-24 : f32
    %72 = vector.broadcast %cst_58 : f32 to vector<8x1xf32>
    %73 = arith.maximumf %71, %72 : vector<8x1xf32>
    %74 = math.rsqrt %73 : vector<8x1xf32>
    %75 = vector.broadcast %74 : vector<8x1xf32> to vector<8x256xf32>
    %76 = arith.mulf %68, %75 : vector<8x256xf32>
    %c0_59 = arith.constant 0 : index
    %c0_60 = arith.constant 0 : index
    %77 = vector.load %arg7[%c0_59, %c0_60] : memref<8x256xf32, #tpu.memory_space<vmem>>, vector<8x256xf32>
    tpu.vector_store %arg7[%c0_59, %c0_60], %76 {strides = array<i32>} : memref<8x256xf32, #tpu.memory_space<vmem>>, vector<8x256xf32>,
    return
  }
  func.func @transform_0(%arg0: i32) -> (i32, i32) {
    %c0_i32 = arith.constant 0 : i32
    %c0_i32_0 = arith.constant 0 : i32
    return %arg0, %c0_i32 : i32, i32
  }
  func.func @transform_1(%arg0: i32) -> (i32, i32) {
    %c0_i32 = arith.constant 0 : i32
    %c0_i32_0 = arith.constant 0 : i32
    return %arg0, %c0_i32 : i32, i32
  }
  func.func @transform_2(%arg0: i32) -> (i32, i32, i32) {
    %c0_i32 = arith.constant 0 : i32
    %c0_i32_0 = arith.constant 0 : i32
    %c0_i32_1 = arith.constant 0 : i32
    %c0_i32_2 = arith.constant 0 : i32
    return %c0_i32, %c0_i32_0, %c0_i32_1 : i32, i32, i32
  }
  func.func @transform_3(%arg0: i32) -> (i32, i32, i32) {
    %c0_i32 = arith.constant 0 : i32
    %c0_i32_0 = arith.constant 0 : i32
    %c0_i32_1 = arith.constant 0 : i32
    %c0_i32_2 = arith.constant 0 : i32
    return %c0_i32, %c0_i32_0, %c0_i32_1 : i32, i32, i32
  }
  func.func @transform_4(%arg0: i32) -> (i32, i32, i32) {
    %c0_i32 = arith.constant 0 : i32
    %c0_i32_0 = arith.constant 0 : i32
    %c0_i32_1 = arith.constant 0 : i32
    %c0_i32_2 = arith.constant 0 : i32
    return %c0_i32, %c0_i32_0, %c0_i32_1 : i32, i32, i32
  }
  func.func @transform_5(%arg0: i32) -> (i32, i32, i32) {
    %c0_i32 = arith.constant 0 : i32
    %c0_i32_0 = arith.constant 0 : i32
    %c0_i32_1 = arith.constant 0 : i32
    %c0_i32_2 = arith.constant 0 : i32
    return %c0_i32, %c0_i32_0, %c0_i32_1 : i32, i32, i32
  }
  func.func @transform_6(%arg0: i32) -> (i32, i32) {
    %c0_i32 = arith.constant 0 : i32
    %c0_i32_0 = arith.constant 0 : i32
    return %arg0, %c0_i32 : i32, i32
  }
}

</mosaic_0001>

<llo_original>
// kernel: tpu_custom_call.1
$region0: #{tpu_custom_call.1}
  #allocation0 [shape = 'u32[]', space=smem, size = 0x4, offset = 0x4, fixed_abs, tag = 'smem constant byte address 0x4 - core index']
  #allocation1 [shape = 'u32[144,128]{1,0:T(1,128)}', space=vmem, size = 0x12000, scoped, tag = 'internal scratch']
  %s0 = inlined_call_operand.hbm [shape: bf16[8,256], index: 0, kind: input, shape index: {}]
  %s1 = inlined_call_operand.hbm [shape: bf16[8,256], index: 1, kind: input, shape index: {}]
  %s2 = inlined_call_operand.hbm [shape: bf16[4,256,256], index: 2, kind: input, shape index: {}]
  %s3 = inlined_call_operand.hbm [shape: f32[4,1,256], index: 3, kind: input, shape index: {}]
  %s4 = inlined_call_operand.hbm [shape: bf16[4,256,256], index: 4, kind: input, shape index: {}]
  %s5 = inlined_call_operand.vmem [shape: f32[4,1,256], index: 5, kind: input, shape index: {}]
  %s6 = inlined_call_operand.hbm [shape: f32[8,256], index: 6, kind: output, shape index: {}]
  %s7 = sld [smem:[#allocation0]]
  $region54: #{tpu_custom_call.1} parent=0
    _
  %s9 = ssub.s32 1, %s7
  %s10 = scalar_select 0, %s9, %s7
  $region1: #{tpu_custom_call.1} parent=0
    #allocation2 [shape = 'u8[4096]{0}', space=vmem, size = 0x1000, scoped, tag = 'input window, operand 0, single buffered']
    #allocation3 [shape = 's32[1]{0}', space=sflag, size = 0x4, scoped, tag = 'scoped memory for tpu_custom_call.1']
    #allocation4 [shape = 's32[1]{0}', space=sflag, size = 0x4, scoped, tag = 'scoped memory for tpu_custom_call.1']
    #allocation5 [shape = 'u8[4096]{0}', space=vmem, size = 0x1000, scoped, tag = 'input window, operand 1, single buffered']
    #allocation6 [shape = 's32[1]{0}', space=sflag, size = 0x4, scoped, tag = 'scoped memory for tpu_custom_call.1']
    #allocation7 [shape = 'u8[524288]{0}', space=vmem, size = 0x80000, scoped, tag = 'input window, operand 2, single buffered']
    #allocation8 [shape = 'u8[4096]{0}', space=vmem, size = 0x1000, scoped, tag = 'input window, operand 3, single buffered']
    #allocation9 [shape = 's32[1]{0}', space=sflag, size = 0x4, scoped, tag = 'scoped memory for tpu_custom_call.1']
    #allocation10 [shape = 'u8[524288]{0}', space=vmem, size = 0x80000, scoped, tag = 'input window, operand 4, single buffered']
    #allocation11 [shape = 'u8[8192]{0}', space=vmem, size = 0x2000, scoped, tag = 'output window, operand 0, single buffered']
    %11 = vsyncpa [#allocation3], 0
    %12 = vsyncpa [#allocation6], 0
    %13 = vsyncpa [#allocation9], 0
    %14 = vsyncpa [#allocation4], 0
    // Predicated region
    $region2: #{tpu_custom_call.1} parent=1 // pred_check
      _
    $region3: #{tpu_custom_call.1} parent=1 // pred_check_branch
      %16 = sbr.rel (0) target = $region5
    $region4: #{tpu_custom_call.1} parent=1 // pred_region
      %s18 = ssub.s32 128, 128
      %19 = vsyncadd [#allocation3], %s18
      %s21 = sshll.u32 [#allocation2], 4
      %s22 = int_to_ptr.vmem [resolvable:$true] %s21
      %24 = dma.hbm_to_vmem [thread:$0]  %s0, 128, %s22, [#allocation3]
    $region5: #{tpu_custom_call.1} parent=1 // pred_fallthru
      _
    // Predicated region
    $region6: #{tpu_custom_call.1} parent=1 // pred_check
      _
    $region7: #{tpu_custom_call.1} parent=1 // pred_check_branch
      %26 = sbr.rel (0) target = $region9
    $region8: #{tpu_custom_call.1} parent=1 // pred_region
      %s28 = ssub.s32 128, 128
      %29 = vsyncadd [#allocation6], %s28
      %s31 = sshll.u32 [#allocation5], 4
      %s32 = int_to_ptr.vmem [resolvable:$true] %s31
      %34 = dma.hbm_to_vmem [thread:$0]  %s1, 128, %s32, [#allocation6]
    $region9: #{tpu_custom_call.1} parent=1 // pred_fallthru
      _
    // Predicated region
    $region10: #{tpu_custom_call.1} parent=1 // pred_check
      _
    $region11: #{tpu_custom_call.1} parent=1 // pred_check_branch
      %36 = sbr.rel (0) target = $region13
    $region12: #{tpu_custom_call.1} parent=1 // pred_region
      %s38 = ssub.s32 16384, 16384
      %39 = vsyncadd [#allocation6], %s38
      %s40 = sshll.u32 [#allocation7], 4
      %s41 = int_to_ptr.vmem [resolvable:$true] %s40
      %46 = dma.hbm_to_vmem [thread:$0]  %s2, 16384, %s41, [#allocation6], 128, 128, 8
    $region13: #{tpu_custom_call.1} parent=1 // pred_fallthru
      _
    // Predicated region
    $region14: #{tpu_custom_call.1} parent=1 // pred_check
      _
    $region15: #{tpu_custom_call.1} parent=1 // pred_check_branch
      %48 = sbr.rel (0) target = $region17
    $region16: #{tpu_custom_call.1} parent=1 // pred_region
      %s50 = ssub.s32 128, 128
      %51 = vsyncadd [#allocation9], %s50
      %s52 = sshll.u32 [#allocation8], 4
      %s53 = int_to_ptr.vmem [resolvable:$true] %s52
      %58 = dma.hbm_to_vmem [thread:$0]  %s3, 128, %s53, [#allocation9], 32, 32, 2
    $region17: #{tpu_custom_call.1} parent=1 // pred_fallthru
      _
    // Predicated region
    $region18: #{tpu_custom_call.1} parent=1 // pred_check
      _
    $region19: #{tpu_custom_call.1} parent=1 // pred_check_branch
      %60 = sbr.rel (0) target = $region21
    $region20: #{tpu_custom_call.1} parent=1 // pred_region
      %s62 = ssub.s32 16384, 16384
      %63 = vsyncadd [#allocation9], %s62
      %s64 = sshll.u32 [#allocation10], 4
      %s65 = int_to_ptr.vmem [resolvable:$true] %s64
      %70 = dma.hbm_to_vmem [thread:$0]  %s4, 16384, %s65, [#allocation9], 128, 128, 8
    $region21: #{tpu_custom_call.1} parent=1 // pred_fallthru
      _
    // Predicated region
    $region22: #{tpu_custom_call.1} parent=1 // pred_check
      _
    $region23: #{tpu_custom_call.1} parent=1 // pred_check_branch
      %72 = sbr.rel (0) target = $region25
    $region24: #{tpu_custom_call.1} parent=1 // pred_region
      _
    $region25: #{tpu_custom_call.1} parent=1 // pred_fallthru
      _
    // Predicated region
    $region26: #{tpu_custom_call.1} parent=1 // pred_check
      _
    $region27: #{tpu_custom_call.1} parent=1 // pred_check_branch
      %74 = sbr.rel (0) target = $region29
    $region28: #{tpu_custom_call.1} parent=1 // pred_region
      %75 = dma.done [#allocation3], 128
    $region29: #{tpu_custom_call.1} parent=1 // pred_fallthru
      _
    // Predicated region
    $region30: #{tpu_custom_call.1} parent=1 // pred_check
      _
    $region31: #{tpu_custom_call.1} parent=1 // pred_check_branch
      %77 = sbr.rel (0) target = $region33
    $region32: #{tpu_custom_call.1} parent=1 // pred_region
      %78 = dma.done [#allocation6], 128
    $region33: #{tpu_custom_call.1} parent=1 // pred_fallthru
      _
    // Predicated region
    $region34: #{tpu_custom_call.1} parent=1 // pred_check
      _
    $region35: #{tpu_custom_call.1} parent=1 // pred_check_branch
      %80 = sbr.rel (0) target = $region37
    $region36: #{tpu_custom_call.1} parent=1 // pred_region
      %81 = dma.done [#allocation6], 16384
    $region37: #{tpu_custom_call.1} parent=1 // pred_fallthru
      _
    // Predicated region
    $region38: #{tpu_custom_call.1} parent=1 // pred_check
      _
    $region39: #{tpu_custom_call.1} parent=1 // pred_check_branch
      %83 = sbr.rel (0) target = $region41
    $region40: #{tpu_custom_call.1} parent=1 // pred_region
      %84 = dma.done [#allocation9], 128
    $region41: #{tpu_custom_call.1} parent=1 // pred_fallthru
      _
    // Predicated region
    $region42: #{tpu_custom_call.1} parent=1 // pred_check
      _
    $region43: #{tpu_custom_call.1} parent=1 // pred_check_branch
      %86 = sbr.rel (0) target = $region45
    $region44: #{tpu_custom_call.1} parent=1 // pred_region
      %87 = dma.done [#allocation9], 16384
    $region45: #{tpu_custom_call.1} parent=1 // pred_fallthru
      _
    %v88 = vld [vmem:[#allocation2] sm:$0xff]
    %v89 = vld [vmem:[#allocation5] sm:$0xff]
    %v90 = vld [vmem:[#allocation7] sm:$0xff]
    %v91 = vld [vmem:[#allocation7 + $0x8] sm:$0xff]
    %v92 = vld [vmem:[#allocation7 + $0x10] sm:$0xff]
    %v93 = vld [vmem:[#allocation7 + $0x18] sm:$0xff]
    %v94 = vld [vmem:[#allocation7 + $0x20] sm:$0xff]
    %v95 = vld [vmem:[#allocation7 + $0x28] sm:$0xff]
    %v96 = vld [vmem:[#allocation7 + $0x30] sm:$0xff]
    %v97 = vld [vmem:[#allocation7 + $0x38] sm:$0xff]
    %v98 = vld [vmem:[#allocation7 + $0x40] sm:$0xff]
    %v99 = vld [vmem:[#allocation7 + $0x48] sm:$0xff]
    %v100 = vld [vmem:[#allocation7 + $0x50] sm:$0xff]
    %v101 = vld [vmem:[#allocation7 + $0x58] sm:$0xff]
    %v102 = vld [vmem:[#allocation7 + $0x60] sm:$0xff]
    %v103 = vld [vmem:[#allocation7 + $0x68] sm:$0xff]
    %v104 = vld [vmem:[#allocation7 + $0x70] sm:$0xff]
    %v105 = vld [vmem:[#allocation7 + $0x78] sm:$0xff]
    %v106 = vld [vmem:[#allocation7 + $0x80] sm:$0xff]
    %v107 = vld [vmem:[#allocation7 + $0x88] sm:$0xff]
    %v108 = vld [vmem:[#allocation7 + $0x90] sm:$0xff]
    %v109 = vld [vmem:[#allocation7 + $0x98] sm:$0xff]
    %v110 = vld [vmem:[#allocation7 + $0xa0] sm:$0xff]
    %v111 = vld [vmem:[#allocation7 + $0xa8] sm:$0xff]
    %v112 = vld [vmem:[#allocation7 + $0xb0] sm:$0xff]
    %v113 = vld [vmem:[#allocation7 + $0xb8] sm:$0xff]
    %v114 = vld [vmem:[#allocation7 + $0xc0] sm:$0xff]
    %v115 = vld [vmem:[#allocation7 + $0xc8] sm:$0xff]
    %v116 = vld [vmem:[#allocation7 + $0xd0] sm:$0xff]
    %v117 = vld [vmem:[#allocation7 + $0xd8] sm:$0xff]
    %v118 = vld [vmem:[#allocation7 + $0xe0] sm:$0xff]
    %v119 = vld [vmem:[#allocation7 + $0xe8] sm:$0xff]
    %v120 = vld [vmem:[#allocation7 + $0xf0] sm:$0xff]
    %v121 = vld [vmem:[#allocation7 + $0xf8] sm:$0xff]
    %v122 = vld [vmem:[#allocation8] sm:$0x3]
    %v124 = vlaneseq
    %v125 = vshrl.u32 %v124, 7
    %v126 = vsub.s32 0, %v125
    %v127 = vrot.slane %v122, %v126
    %v128 = vlaneseq
    %v129 = vshrl.u32 %v128, 7
    %v130 = vsub.s32 1, %v129
    %v131 = vrot.slane %v122, %v130
    %v135 = vunpack.c.l.b16 %v88
    %v136 = vunpack.c.h.b16 %v88
    %v137 = vpack.c.b16 %v135, %v135
    %v138 = vpack.c.b16 %v136, %v136
    %v173 = vunpack.c.l.b16 %v90
    %v174 = vunpack.c.h.b16 %v90
    %v175 = vunpack.c.l.b16 %v91
    %v176 = vunpack.c.h.b16 %v91
    %v177 = vunpack.c.l.b16 %v92
    %v178 = vunpack.c.h.b16 %v92
    %v179 = vunpack.c.l.b16 %v93
    %v180 = vunpack.c.h.b16 %v93
    %v181 = vunpack.c.l.b16 %v94
    %v182 = vunpack.c.h.b16 %v94
    %v183 = vunpack.c.l.b16 %v95
    %v184 = vunpack.c.h.b16 %v95
    %v185 = vunpack.c.l.b16 %v96
    %v186 = vunpack.c.h.b16 %v96
    %v187 = vunpack.c.l.b16 %v97
    %v188 = vunpack.c.h.b16 %v97
    %v189 = vunpack.c.l.b16 %v98
    %v190 = vunpack.c.h.b16 %v98
    %v191 = vunpack.c.l.b16 %v99
    %v192 = vunpack.c.h.b16 %v99
    %v193 = vunpack.c.l.b16 %v100
    %v194 = vunpack.c.h.b16 %v100
    %v195 = vunpack.c.l.b16 %v101
    %v196 = vunpack.c.h.b16 %v101
    %v197 = vunpack.c.l.b16 %v102
    %v198 = vunpack.c.h.b16 %v102
    %v199 = vunpack.c.l.b16 %v103
    %v200 = vunpack.c.h.b16 %v103
    %v201 = vunpack.c.l.b16 %v104
    %v202 = vunpack.c.h.b16 %v104
    %v203 = vunpack.c.l.b16 %v105
    %v204 = vunpack.c.h.b16 %v105
    %v205 = vunpack.c.l.b16 %v106
    %v206 = vunpack.c.h.b16 %v106
    %v207 = vunpack.c.l.b16 %v107
    %v208 = vunpack.c.h.b16 %v107
    %v209 = vunpack.c.l.b16 %v108
    %v210 = vunpack.c.h.b16 %v108
    %v211 = vunpack.c.l.b16 %v109
    %v212 = vunpack.c.h.b16 %v109
    %v213 = vunpack.c.l.b16 %v110
    %v214 = vunpack.c.h.b16 %v110
    %v215 = vunpack.c.l.b16 %v111
    %v216 = vunpack.c.h.b16 %v111
    %v217 = vunpack.c.l.b16 %v112
    %v218 = vunpack.c.h.b16 %v112
    %v219 = vunpack.c.l.b16 %v113
    %v220 = vunpack.c.h.b16 %v113
    %v221 = vunpack.c.l.b16 %v114
    %v222 = vunpack.c.h.b16 %v114
    %v223 = vunpack.c.l.b16 %v115
    %v224 = vunpack.c.h.b16 %v115
    %v225 = vunpack.c.l.b16 %v116
    %v226 = vunpack.c.h.b16 %v116
    %v227 = vunpack.c.l.b16 %v117
    %v228 = vunpack.c.h.b16 %v117
    %v229 = vunpack.c.l.b16 %v118
    %v230 = vunpack.c.h.b16 %v118
    %v231 = vunpack.c.l.b16 %v119
    %v232 = vunpack.c.h.b16 %v119
    %v233 = vunpack.c.l.b16 %v120
    %v234 = vunpack.c.h.b16 %v120
    %v235 = vunpack.c.l.b16 %v121
    %v236 = vunpack.c.h.b16 %v121
    %v237 = vpack.c.b16 %v175, %v173
    %v238 = vpack.c.b16 %v176, %v174
    %v239 = vpack.c.b16 %v179, %v177
    %v240 = vpack.c.b16 %v180, %v178
    %v241 = vpack.c.b16 %v183, %v181
    %v242 = vpack.c.b16 %v184, %v182
    %v243 = vpack.c.b16 %v187, %v185
    %v244 = vpack.c.b16 %v188, %v186
    %v245 = vpack.c.b16 %v191, %v189
    %v246 = vpack.c.b16 %v192, %v190
    %v247 = vpack.c.b16 %v195, %v193
    %v248 = vpack.c.b16 %v196, %v194
    %v249 = vpack.c.b16 %v199, %v197
    %v250 = vpack.c.b16 %v200, %v198
    %v251 = vpack.c.b16 %v203, %v201
    %v252 = vpack.c.b16 %v204, %v202
    %v253 = vpack.c.b16 %v207, %v205
    %v254 = vpack.c.b16 %v208, %v206
    %v255 = vpack.c.b16 %v211, %v209
    %v256 = vpack.c.b16 %v212, %v210
    %v257 = vpack.c.b16 %v215, %v213
    %v258 = vpack.c.b16 %v216, %v214
    %v259 = vpack.c.b16 %v219, %v217
    %v260 = vpack.c.b16 %v220, %v218
    %v261 = vpack.c.b16 %v223, %v221
    %v262 = vpack.c.b16 %v224, %v222
    %v263 = vpack.c.b16 %v227, %v225
    %v264 = vpack.c.b16 %v228, %v226
    %v265 = vpack.c.b16 %v231, %v229
    %v266 = vpack.c.b16 %v232, %v230
    %v267 = vpack.c.b16 %v235, %v233
    %v268 = vpack.c.b16 %v236, %v234
    %301 = vmatprep.subr.bf16.mxu0 %v252
    %302 = vmatpush1.bf16.msra.mxu0 %v251
    %303 = vmatprep.subr.bf16.mxu0 %v250
    %304 = vmatpush1.bf16.msra.mxu0 %v249
    %305 = vmatprep.subr.bf16.mxu0 %v248
    %306 = vmatpush1.bf16.msra.mxu0 %v247
    %307 = vmatprep.subr.bf16.mxu0 %v246
    %308 = vmatpush1.bf16.msra.mxu0 %v245
    %309 = vmatprep.subr.bf16.mxu0 %v244
    %310 = vmatpush1.bf16.msra.mxu0 %v243
    %311 = vmatprep.subr.bf16.mxu0 %v242
    %312 = vmatpush1.bf16.msra.mxu0 %v241
    %313 = vmatprep.subr.bf16.mxu0 %v240
    %314 = vmatpush1.bf16.msra.mxu0 %v239
    %315 = vmatprep.subr.bf16.mxu0 %v238
    %316 = vmatpush1.bf16.msra.mxu0 %v237
    %317 = vmatprep.subr.bf16.mxu0 %v268
    %318 = vmatpush2.bf16.msra.mxu0 %v267
    %319 = vmatprep.subr.bf16.mxu0 %v266
    %320 = vmatpush2.bf16.msra.mxu0 %v265
    %321 = vmatprep.subr.bf16.mxu0 %v264
    %322 = vmatpush2.bf16.msra.mxu0 %v263
    %323 = vmatprep.subr.bf16.mxu0 %v262
    %324 = vmatpush2.bf16.msra.mxu0 %v261
    %325 = vmatprep.subr.bf16.mxu0 %v260
    %326 = vmatpush2.bf16.msra.mxu0 %v259
    %327 = vmatprep.subr.bf16.mxu0 %v258
    %328 = vmatpush2.bf16.msra.mxu0 %v257
    %329 = vmatprep.subr.bf16.mxu0 %v256
    %330 = vmatpush2.bf16.msra.mxu0 %v255
    %331 = vmatprep.subr.bf16.mxu0 %v254
    %332 = vmatpush2.bf16.msra.mxu0 %v253
    %333 = vmatprep.mubr.bf16.mxu0 %v138
    %334 = vmatmul.mubr.bf16.gmra.mxu0 %v137
    %v335 = vpop.f32.mrf.mxu0
    %v336 = vadd.f32 %v127, %v335
    %v337 = vpop.f32.mrf.mxu0
    %v338 = vadd.f32 %v131, %v337
    %v339 = vpop.f32.mrf.mxu0
    %v340 = vpop.f32.mrf.mxu0
    %341 = vdwg.mxu0
    %v342 = vld [vmem:[#allocation10] sm:$0xff]
    %v343 = vld [vmem:[#allocation10 + $0x8] sm:$0xff]
    %v344 = vld [vmem:[#allocation10 + $0x10] sm:$0xff]
    %v345 = vld [vmem:[#allocation10 + $0x18] sm:$0xff]
    %v346 = vld [vmem:[#allocation10 + $0x20] sm:$0xff]
    %v347 = vld [vmem:[#allocation10 + $0x28] sm:$0xff]
    %v348 = vld [vmem:[#allocation10 + $0x30] sm:$0xff]
    %v349 = vld [vmem:[#allocation10 + $0x38] sm:$0xff]
    %v350 = vld [vmem:[#allocation10 + $0x40] sm:$0xff]
    %v351 = vld [vmem:[#allocation10 + $0x48] sm:$0xff]
    %v352 = vld [vmem:[#allocation10 + $0x50] sm:$0xff]
    %v353 = vld [vmem:[#allocation10 + $0x58] sm:$0xff]
    %v354 = vld [vmem:[#allocation10 + $0x60] sm:$0xff]
    %v355 = vld [vmem:[#allocation10 + $0x68] sm:$0xff]
    %v356 = vld [vmem:[#allocation10 + $0x70] sm:$0xff]
    %v357 = vld [vmem:[#allocation10 + $0x78] sm:$0xff]
    %v358 = vld [vmem:[#allocation10 + $0x80] sm:$0xff]
    %v359 = vld [vmem:[#allocation10 + $0x88] sm:$0xff]
    %v360 = vld [vmem:[#allocation10 + $0x90] sm:$0xff]
    %v361 = vld [vmem:[#allocation10 + $0x98] sm:$0xff]
    %v362 = vld [vmem:[#allocation10 + $0xa0] sm:$0xff]
    %v363 = vld [vmem:[#allocation10 + $0xa8] sm:$0xff]
    %v364 = vld [vmem:[#allocation10 + $0xb0] sm:$0xff]
    %v365 = vld [vmem:[#allocation10 + $0xb8] sm:$0xff]
    %v366 = vld [vmem:[#allocation10 + $0xc0] sm:$0xff]
    %v367 = vld [vmem:[#allocation10 + $0xc8] sm:$0xff]
    %v368 = vld [vmem:[#allocation10 + $0xd0] sm:$0xff]
    %v369 = vld [vmem:[#allocation10 + $0xd8] sm:$0xff]
    %v370 = vld [vmem:[#allocation10 + $0xe0] sm:$0xff]
    %v371 = vld [vmem:[#allocation10 + $0xe8] sm:$0xff]
    %v372 = vld [vmem:[#allocation10 + $0xf0] sm:$0xff]
    %v373 = vld [vmem:[#allocation10 + $0xf8] sm:$0xff]
    %v374 = vld [vmem:[%s5] sm:$0x3]
    %v376 = vlaneseq
    %v377 = vshrl.u32 %v376, 7
    %v378 = vsub.s32 0, %v377
    %v379 = vrot.slane %v374, %v378
    %v380 = vlaneseq
    %v381 = vshrl.u32 %v380, 7
    %v382 = vsub.s32 1, %v381
    %v383 = vrot.slane %v374, %v382
    %v387 = vunpack.c.l.b16 %v89
    %v388 = vunpack.c.h.b16 %v89
    %v389 = vpack.c.b16 %v387, %v387
    %v390 = vpack.c.b16 %v388, %v388
    %v425 = vunpack.c.l.b16 %v342
    %v426 = vunpack.c.h.b16 %v342
    %v427 = vunpack.c.l.b16 %v343
    %v428 = vunpack.c.h.b16 %v343
    %v429 = vunpack.c.l.b16 %v344
    %v430 = vunpack.c.h.b16 %v344
    %v431 = vunpack.c.l.b16 %v345
    %v432 = vunpack.c.h.b16 %v345
    %v433 = vunpack.c.l.b16 %v346
    %v434 = vunpack.c.h.b16 %v346
    %v435 = vunpack.c.l.b16 %v347
    %v436 = vunpack.c.h.b16 %v347
    %v437 = vunpack.c.l.b16 %v348
    %v438 = vunpack.c.h.b16 %v348
    %v439 = vunpack.c.l.b16 %v349
    %v440 = vunpack.c.h.b16 %v349
    %v441 = vunpack.c.l.b16 %v350
    %v442 = vunpack.c.h.b16 %v350
    %v443 = vunpack.c.l.b16 %v351
    %v444 = vunpack.c.h.b16 %v351
    %v445 = vunpack.c.l.b16 %v352
    %v446 = vunpack.c.h.b16 %v352
    %v447 = vunpack.c.l.b16 %v353
    %v448 = vunpack.c.h.b16 %v353
    %v449 = vunpack.c.l.b16 %v354
    %v450 = vunpack.c.h.b16 %v354
    %v451 = vunpack.c.l.b16 %v355
    %v452 = vunpack.c.h.b16 %v355
    %v453 = vunpack.c.l.b16 %v356
    %v454 = vunpack.c.h.b16 %v356
    %v455 = vunpack.c.l.b16 %v357
    %v456 = vunpack.c.h.b16 %v357
    %v457 = vunpack.c.l.b16 %v358
    %v458 = vunpack.c.h.b16 %v358
    %v459 = vunpack.c.l.b16 %v359
    %v460 = vunpack.c.h.b16 %v359
    %v461 = vunpack.c.l.b16 %v360
    %v462 = vunpack.c.h.b16 %v360
    %v463 = vunpack.c.l.b16 %v361
    %v464 = vunpack.c.h.b16 %v361
    %v465 = vunpack.c.l.b16 %v362
    %v466 = vunpack.c.h.b16 %v362
    %v467 = vunpack.c.l.b16 %v363
    %v468 = vunpack.c.h.b16 %v363
    %v469 = vunpack.c.l.b16 %v364
    %v470 = vunpack.c.h.b16 %v364
    %v471 = vunpack.c.l.b16 %v365
    %v472 = vunpack.c.h.b16 %v365
    %v473 = vunpack.c.l.b16 %v366
    %v474 = vunpack.c.h.b16 %v366
    %v475 = vunpack.c.l.b16 %v367
    %v476 = vunpack.c.h.b16 %v367
    %v477 = vunpack.c.l.b16 %v368
    %v478 = vunpack.c.h.b16 %v368
    %v479 = vunpack.c.l.b16 %v369
    %v480 = vunpack.c.h.b16 %v369
    %v481 = vunpack.c.l.b16 %v370
    %v482 = vunpack.c.h.b16 %v370
    %v483 = vunpack.c.l.b16 %v371
    %v484 = vunpack.c.h.b16 %v371
    %v485 = vunpack.c.l.b16 %v372
    %v486 = vunpack.c.h.b16 %v372
    %v487 = vunpack.c.l.b16 %v373
    %v488 = vunpack.c.h.b16 %v373
    %v489 = vpack.c.b16 %v427, %v425
    %v490 = vpack.c.b16 %v428, %v426
    %v491 = vpack.c.b16 %v431, %v429
    %v492 = vpack.c.b16 %v432, %v430
    %v493 = vpack.c.b16 %v435, %v433
    %v494 = vpack.c.b16 %v436, %v434
    %v495 = vpack.c.b16 %v439, %v437
    %v496 = vpack.c.b16 %v440, %v438
    %v497 = vpack.c.b16 %v443, %v441
    %v498 = vpack.c.b16 %v444, %v442
    %v499 = vpack.c.b16 %v447, %v445
    %v500 = vpack.c.b16 %v448, %v446
    %v501 = vpack.c.b16 %v451, %v449
    %v502 = vpack.c.b16 %v452, %v450
    %v503 = vpack.c.b16 %v455, %v453
    %v504 = vpack.c.b16 %v456, %v454
    %v505 = vpack.c.b16 %v459, %v457
    %v506 = vpack.c.b16 %v460, %v458
    %v507 = vpack.c.b16 %v463, %v461
    %v508 = vpack.c.b16 %v464, %v462
    %v509 = vpack.c.b16 %v467, %v465
    %v510 = vpack.c.b16 %v468, %v466
    %v511 = vpack.c.b16 %v471, %v469
    %v512 = vpack.c.b16 %v472, %v470
    %v513 = vpack.c.b16 %v475, %v473
    %v514 = vpack.c.b16 %v476, %v474
    %v515 = vpack.c.b16 %v479, %v477
    %v516 = vpack.c.b16 %v480, %v478
    %v517 = vpack.c.b16 %v483, %v481
    %v518 = vpack.c.b16 %v484, %v482
    %v519 = vpack.c.b16 %v487, %v485
    %v520 = vpack.c.b16 %v488, %v486
    %553 = vmatprep.subr.bf16.mxu0 %v504
    %554 = vmatpush1.bf16.msra.mxu0 %v503
    %555 = vmatprep.subr.bf16.mxu0 %v502
    %556 = vmatpush1.bf16.msra.mxu0 %v501
    %557 = vmatprep.subr.bf16.mxu0 %v500
    %558 = vmatpush1.bf16.msra.mxu0 %v499
    %559 = vmatprep.subr.bf16.mxu0 %v498
    %560 = vmatpush1.bf16.msra.mxu0 %v497
    %561 = vmatprep.subr.bf16.mxu0 %v496
    %562 = vmatpush1.bf16.msra.mxu0 %v495
    %563 = vmatprep.subr.bf16.mxu0 %v494
    %564 = vmatpush1.bf16.msra.mxu0 %v493
    %565 = vmatprep.subr.bf16.mxu0 %v492
    %566 = vmatpush1.bf16.msra.mxu0 %v491
    %567 = vmatprep.subr.bf16.mxu0 %v490
    %568 = vmatpush1.bf16.msra.mxu0 %v489
    %569 = vmatprep.subr.bf16.mxu0 %v520
    %570 = vmatpush2.bf16.msra.mxu0 %v519
    %571 = vmatprep.subr.bf16.mxu0 %v518
    %572 = vmatpush2.bf16.msra.mxu0 %v517
    %573 = vmatprep.subr.bf16.mxu0 %v516
    %574 = vmatpush2.bf16.msra.mxu0 %v515
    %575 = vmatprep.subr.bf16.mxu0 %v514
    %576 = vmatpush2.bf16.msra.mxu0 %v513
    %577 = vmatprep.subr.bf16.mxu0 %v512
    %578 = vmatpush2.bf16.msra.mxu0 %v511
    %579 = vmatprep.subr.bf16.mxu0 %v510
    %580 = vmatpush2.bf16.msra.mxu0 %v509
    %581 = vmatprep.subr.bf16.mxu0 %v508
    %582 = vmatpush2.bf16.msra.mxu0 %v507
    %583 = vmatprep.subr.bf16.mxu0 %v506
    %584 = vmatpush2.bf16.msra.mxu0 %v505
    %585 = vmatprep.mubr.bf16.mxu0 %v390
    %586 = vmatmul.mubr.bf16.gmra.mxu0 %v389
    %v587 = vpop.f32.mrf.mxu0
    %v588 = vadd.f32 %v379, %v587
    %v589 = vpop.f32.mrf.mxu0
    %v590 = vadd.f32 %v383, %v589
    %v591 = vpop.f32.mrf.mxu0
    %v592 = vpop.f32.mrf.mxu0
    %593 = vdwg.mxu0
    %v594 = vmul.f32 %v336, %v588
    %v595 = vmul.f32 %v338, %v590
    %v596 = vadd.f32 %v594, 0.0
    %v597 = vadd.f32 %v595, 0.0
    %s598 = scalar_lea.vmem [#allocation7], 256
    %v599 = vld [vmem:[%s598] sm:$0xff]
    %v600 = vld [vmem:[%s598 + $0x8] sm:$0xff]
    %v601 = vld [vmem:[%s598 + $0x10] sm:$0xff]
    %v602 = vld [vmem:[%s598 + $0x18] sm:$0xff]
    %v603 = vld [vmem:[%s598 + $0x20] sm:$0xff]
    %v604 = vld [vmem:[%s598 + $0x28] sm:$0xff]
    %v605 = vld [vmem:[%s598 + $0x30] sm:$0xff]
    %v606 = vld [vmem:[%s598 + $0x38] sm:$0xff]
    %v607 = vld [vmem:[%s598 + $0x40] sm:$0xff]
    %v608 = vld [vmem:[%s598 + $0x48] sm:$0xff]
    %v609 = vld [vmem:[%s598 + $0x50] sm:$0xff]
    %v610 = vld [vmem:[%s598 + $0x58] sm:$0xff]
    %v611 = vld [vmem:[%s598 + $0x60] sm:$0xff]
    %v612 = vld [vmem:[%s598 + $0x68] sm:$0xff]
    %v613 = vld [vmem:[%s598 + $0x70] sm:$0xff]
    %v614 = vld [vmem:[%s598 + $0x78] sm:$0xff]
    %v615 = vld [vmem:[%s598 + $0x80] sm:$0xff]
    %v616 = vld [vmem:[%s598 + $0x88] sm:$0xff]
    %v617 = vld [vmem:[%s598 + $0x90] sm:$0xff]
    %v618 = vld [vmem:[%s598 + $0x98] sm:$0xff]
    %v619 = vld [vmem:[%s598 + $0xa0] sm:$0xff]
    %v620 = vld [vmem:[%s598 + $0xa8] sm:$0xff]
    %v621 = vld [vmem:[%s598 + $0xb0] sm:$0xff]
    %v622 = vld [vmem:[%s598 + $0xb8] sm:$0xff]
    %v623 = vld [vmem:[%s598 + $0xc0] sm:$0xff]
    %v624 = vld [vmem:[%s598 + $0xc8] sm:$0xff]
    %v625 = vld [vmem:[%s598 + $0xd0] sm:$0xff]
    %v626 = vld [vmem:[%s598 + $0xd8] sm:$0xff]
    %v627 = vld [vmem:[%s598 + $0xe0] sm:$0xff]
    %v628 = vld [vmem:[%s598 + $0xe8] sm:$0xff]
    %v629 = vld [vmem:[%s598 + $0xf0] sm:$0xff]
    %v630 = vld [vmem:[%s598 + $0xf8] sm:$0xff]
    %s631 = scalar_lea.vmem [#allocation8], 2
    %v632 = vld [vmem:[%s631] sm:$0x3]
    %v634 = vlaneseq
    %v635 = vshrl.u32 %v634, 7
    %v636 = vsub.s32 0, %v635
    %v637 = vrot.slane %v632, %v636
    %v638 = vlaneseq
    %v639 = vshrl.u32 %v638, 7
    %v640 = vsub.s32 1, %v639
    %v641 = vrot.slane %v632, %v640
    %v676 = vunpack.c.l.b16 %v599
    %v677 = vunpack.c.h.b16 %v599
    %v678 = vunpack.c.l.b16 %v600
    %v679 = vunpack.c.h.b16 %v600
    %v680 = vunpack.c.l.b16 %v601
    %v681 = vunpack.c.h.b16 %v601
    %v682 = vunpack.c.l.b16 %v602
    %v683 = vunpack.c.h.b16 %v602
    %v684 = vunpack.c.l.b16 %v603
    %v685 = vunpack.c.h.b16 %v603
    %v686 = vunpack.c.l.b16 %v604
    %v687 = vunpack.c.h.b16 %v604
    %v688 = vunpack.c.l.b16 %v605
    %v689 = vunpack.c.h.b16 %v605
    %v690 = vunpack.c.l.b16 %v606
    %v691 = vunpack.c.h.b16 %v606
    %v692 = vunpack.c.l.b16 %v607
    %v693 = vunpack.c.h.b16 %v607
    %v694 = vunpack.c.l.b16 %v608
    %v695 = vunpack.c.h.b16 %v608
    %v696 = vunpack.c.l.b16 %v609
    %v697 = vunpack.c.h.b16 %v609
    %v698 = vunpack.c.l.b16 %v610
    %v699 = vunpack.c.h.b16 %v610
    %v700 = vunpack.c.l.b16 %v611
    %v701 = vunpack.c.h.b16 %v611
    %v702 = vunpack.c.l.b16 %v612
    %v703 = vunpack.c.h.b16 %v612
    %v704 = vunpack.c.l.b16 %v613
    %v705 = vunpack.c.h.b16 %v613
    %v706 = vunpack.c.l.b16 %v614
    %v707 = vunpack.c.h.b16 %v614
    %v708 = vunpack.c.l.b16 %v615
    %v709 = vunpack.c.h.b16 %v615
    %v710 = vunpack.c.l.b16 %v616
    %v711 = vunpack.c.h.b16 %v616
    %v712 = vunpack.c.l.b16 %v617
    %v713 = vunpack.c.h.b16 %v617
    %v714 = vunpack.c.l.b16 %v618
    %v715 = vunpack.c.h.b16 %v618
    %v716 = vunpack.c.l.b16 %v619
    %v717 = vunpack.c.h.b16 %v619
    %v718 = vunpack.c.l.b16 %v620
    %v719 = vunpack.c.h.b16 %v620
    %v720 = vunpack.c.l.b16 %v621
    %v721 = vunpack.c.h.b16 %v621
    %v722 = vunpack.c.l.b16 %v622
    %v723 = vunpack.c.h.b16 %v622
    %v724 = vunpack.c.l.b16 %v623
    %v725 = vunpack.c.h.b16 %v623
    %v726 = vunpack.c.l.b16 %v624
    %v727 = vunpack.c.h.b16 %v624
    %v728 = vunpack.c.l.b16 %v625
    %v729 = vunpack.c.h.b16 %v625
    %v730 = vunpack.c.l.b16 %v626
    %v731 = vunpack.c.h.b16 %v626
    %v732 = vunpack.c.l.b16 %v627
    %v733 = vunpack.c.h.b16 %v627
    %v734 = vunpack.c.l.b16 %v628
    %v735 = vunpack.c.h.b16 %v628
    %v736 = vunpack.c.l.b16 %v629
    %v737 = vunpack.c.h.b16 %v629
    %v738 = vunpack.c.l.b16 %v630
    %v739 = vunpack.c.h.b16 %v630
    %v740 = vpack.c.b16 %v678, %v676
    %v741 = vpack.c.b16 %v679, %v677
    %v742 = vpack.c.b16 %v682, %v680
    %v743 = vpack.c.b16 %v683, %v681
    %v744 = vpack.c.b16 %v686, %v684
    %v745 = vpack.c.b16 %v687, %v685
    %v746 = vpack.c.b16 %v690, %v688
    %v747 = vpack.c.b16 %v691, %v689
    %v748 = vpack.c.b16 %v694, %v692
    %v749 = vpack.c.b16 %v695, %v693
    %v750 = vpack.c.b16 %v698, %v696
    %v751 = vpack.c.b16 %v699, %v697
    %v752 = vpack.c.b16 %v702, %v700
    %v753 = vpack.c.b16 %v703, %v701
    %v754 = vpack.c.b16 %v706, %v704
    %v755 = vpack.c.b16 %v707, %v705
    %v756 = vpack.c.b16 %v710, %v708
    %v757 = vpack.c.b16 %v711, %v709
    %v758 = vpack.c.b16 %v714, %v712
    %v759 = vpack.c.b16 %v715, %v713
    %v760 = vpack.c.b16 %v718, %v716
    %v761 = vpack.c.b16 %v719, %v717
    %v762 = vpack.c.b16 %v722, %v720
    %v763 = vpack.c.b16 %v723, %v721
    %v764 = vpack.c.b16 %v726, %v724
    %v765 = vpack.c.b16 %v727, %v725
    %v766 = vpack.c.b16 %v730, %v728
    %v767 = vpack.c.b16 %v731, %v729
    %v768 = vpack.c.b16 %v734, %v732
    %v769 = vpack.c.b16 %v735, %v733
    %v770 = vpack.c.b16 %v738, %v736
    %v771 = vpack.c.b16 %v739, %v737
    %804 = vmatprep.subr.bf16.mxu0 %v755
    %805 = vmatpush1.bf16.msra.mxu0 %v754
    %806 = vmatprep.subr.bf16.mxu0 %v753
    %807 = vmatpush1.bf16.msra.mxu0 %v752
    %808 = vmatprep.subr.bf16.mxu0 %v751
    %809 = vmatpush1.bf16.msra.mxu0 %v750
    %810 = vmatprep.subr.bf16.mxu0 %v749
    %811 = vmatpush1.bf16.msra.mxu0 %v748
    %812 = vmatprep.subr.bf16.mxu0 %v747
    %813 = vmatpush1.bf16.msra.mxu0 %v746
    %814 = vmatprep.subr.bf16.mxu0 %v745
    %815 = vmatpush1.bf16.msra.mxu0 %v744
    %816 = vmatprep.subr.bf16.mxu0 %v743
    %817 = vmatpush1.bf16.msra.mxu0 %v742
    %818 = vmatprep.subr.bf16.mxu0 %v741
    %819 = vmatpush1.bf16.msra.mxu0 %v740
    %820 = vmatprep.subr.bf16.mxu0 %v771
    %821 = vmatpush2.bf16.msra.mxu0 %v770
    %822 = vmatprep.subr.bf16.mxu0 %v769
    %823 = vmatpush2.bf16.msra.mxu0 %v768
    %824 = vmatprep.subr.bf16.mxu0 %v767
    %825 = vmatpush2.bf16.msra.mxu0 %v766
    %826 = vmatprep.subr.bf16.mxu0 %v765
    %827 = vmatpush2.bf16.msra.mxu0 %v764
    %828 = vmatprep.subr.bf16.mxu0 %v763
    %829 = vmatpush2.bf16.msra.mxu0 %v762
    %830 = vmatprep.subr.bf16.mxu0 %v761
    %831 = vmatpush2.bf16.msra.mxu0 %v760
    %832 = vmatprep.subr.bf16.mxu0 %v759
    %833 = vmatpush2.bf16.msra.mxu0 %v758
    %834 = vmatprep.subr.bf16.mxu0 %v757
    %835 = vmatpush2.bf16.msra.mxu0 %v756
    %836 = vmatprep.mubr.bf16.mxu0 %v138
    %837 = vmatmul.mubr.bf16.gmra.mxu0 %v137
    %v838 = vpop.f32.mrf.mxu0
    %v839 = vadd.f32 %v637, %v838
    %v840 = vpop.f32.mrf.mxu0
    %v841 = vadd.f32 %v641, %v840
    %v842 = vpop.f32.mrf.mxu0
    %v843 = vpop.f32.mrf.mxu0
    %844 = vdwg.mxu0
    %s845 = scalar_lea.vmem [#allocation10], 256
    %v846 = vld [vmem:[%s845] sm:$0xff]
    %v847 = vld [vmem:[%s845 + $0x8] sm:$0xff]
    %v848 = vld [vmem:[%s845 + $0x10] sm:$0xff]
    %v849 = vld [vmem:[%s845 + $0x18] sm:$0xff]
    %v850 = vld [vmem:[%s845 + $0x20] sm:$0xff]
    %v851 = vld [vmem:[%s845 + $0x28] sm:$0xff]
    %v852 = vld [vmem:[%s845 + $0x30] sm:$0xff]
    %v853 = vld [vmem:[%s845 + $0x38] sm:$0xff]
    %v854 = vld [vmem:[%s845 + $0x40] sm:$0xff]
    %v855 = vld [vmem:[%s845 + $0x48] sm:$0xff]
    %v856 = vld [vmem:[%s845 + $0x50] sm:$0xff]
    %v857 = vld [vmem:[%s845 + $0x58] sm:$0xff]
    %v858 = vld [vmem:[%s845 + $0x60] sm:$0xff]
    %v859 = vld [vmem:[%s845 + $0x68] sm:$0xff]
    %v860 = vld [vmem:[%s845 + $0x70] sm:$0xff]
    %v861 = vld [vmem:[%s845 + $0x78] sm:$0xff]
    %v862 = vld [vmem:[%s845 + $0x80] sm:$0xff]
    %v863 = vld [vmem:[%s845 + $0x88] sm:$0xff]
    %v864 = vld [vmem:[%s845 + $0x90] sm:$0xff]
    %v865 = vld [vmem:[%s845 + $0x98] sm:$0xff]
    %v866 = vld [vmem:[%s845 + $0xa0] sm:$0xff]
    %v867 = vld [vmem:[%s845 + $0xa8] sm:$0xff]
    %v868 = vld [vmem:[%s845 + $0xb0] sm:$0xff]
    %v869 = vld [vmem:[%s845 + $0xb8] sm:$0xff]
    %v870 = vld [vmem:[%s845 + $0xc0] sm:$0xff]
    %v871 = vld [vmem:[%s845 + $0xc8] sm:$0xff]
    %v872 = vld [vmem:[%s845 + $0xd0] sm:$0xff]
    %v873 = vld [vmem:[%s845 + $0xd8] sm:$0xff]
    %v874 = vld [vmem:[%s845 + $0xe0] sm:$0xff]
    %v875 = vld [vmem:[%s845 + $0xe8] sm:$0xff]
    %v876 = vld [vmem:[%s845 + $0xf0] sm:$0xff]
    %v877 = vld [vmem:[%s845 + $0xf8] sm:$0xff]
    %s878 = scalar_lea.vmem %s5, 2
    %v879 = vld [vmem:[%s878] sm:$0x3]
    %v881 = vlaneseq
    %v882 = vshrl.u32 %v881, 7
    %v883 = vsub.s32 0, %v882
    %v884 = vrot.slane %v879, %v883
    %v885 = vlaneseq
    %v886 = vshrl.u32 %v885, 7
    %v887 = vsub.s32 1, %v886
    %v888 = vrot.slane %v879, %v887
    %v923 = vunpack.c.l.b16 %v846
    %v924 = vunpack.c.h.b16 %v846
    %v925 = vunpack.c.l.b16 %v847
    %v926 = vunpack.c.h.b16 %v847
    %v927 = vunpack.c.l.b16 %v848
    %v928 = vunpack.c.h.b16 %v848
    %v929 = vunpack.c.l.b16 %v849
    %v930 = vunpack.c.h.b16 %v849
    %v931 = vunpack.c.l.b16 %v850
    %v932 = vunpack.c.h.b16 %v850
    %v933 = vunpack.c.l.b16 %v851
    %v934 = vunpack.c.h.b16 %v851
    %v935 = vunpack.c.l.b16 %v852
    %v936 = vunpack.c.h.b16 %v852
    %v937 = vunpack.c.l.b16 %v853
    %v938 = vunpack.c.h.b16 %v853
    %v939 = vunpack.c.l.b16 %v854
    %v940 = vunpack.c.h.b16 %v854
    %v941 = vunpack.c.l.b16 %v855
    %v942 = vunpack.c.h.b16 %v855
    %v943 = vunpack.c.l.b16 %v856
    %v944 = vunpack.c.h.b16 %v856
    %v945 = vunpack.c.l.b16 %v857
    %v946 = vunpack.c.h.b16 %v857
    %v947 = vunpack.c.l.b16 %v858
    %v948 = vunpack.c.h.b16 %v858
    %v949 = vunpack.c.l.b16 %v859
    %v950 = vunpack.c.h.b16 %v859
    %v951 = vunpack.c.l.b16 %v860
    %v952 = vunpack.c.h.b16 %v860
    %v953 = vunpack.c.l.b16 %v861
    %v954 = vunpack.c.h.b16 %v861
    %v955 = vunpack.c.l.b16 %v862
    %v956 = vunpack.c.h.b16 %v862
    %v957 = vunpack.c.l.b16 %v863
    %v958 = vunpack.c.h.b16 %v863
    %v959 = vunpack.c.l.b16 %v864
    %v960 = vunpack.c.h.b16 %v864
    %v961 = vunpack.c.l.b16 %v865
    %v962 = vunpack.c.h.b16 %v865
    %v963 = vunpack.c.l.b16 %v866
    %v964 = vunpack.c.h.b16 %v866
    %v965 = vunpack.c.l.b16 %v867
    %v966 = vunpack.c.h.b16 %v867
    %v967 = vunpack.c.l.b16 %v868
    %v968 = vunpack.c.h.b16 %v868
    %v969 = vunpack.c.l.b16 %v869
    %v970 = vunpack.c.h.b16 %v869
    %v971 = vunpack.c.l.b16 %v870
    %v972 = vunpack.c.h.b16 %v870
    %v973 = vunpack.c.l.b16 %v871
    %v974 = vunpack.c.h.b16 %v871
    %v975 = vunpack.c.l.b16 %v872
    %v976 = vunpack.c.h.b16 %v872
    %v977 = vunpack.c.l.b16 %v873
    %v978 = vunpack.c.h.b16 %v873
    %v979 = vunpack.c.l.b16 %v874
    %v980 = vunpack.c.h.b16 %v874
    %v981 = vunpack.c.l.b16 %v875
    %v982 = vunpack.c.h.b16 %v875
    %v983 = vunpack.c.l.b16 %v876
    %v984 = vunpack.c.h.b16 %v876
    %v985 = vunpack.c.l.b16 %v877
    %v986 = vunpack.c.h.b16 %v877
    %v987 = vpack.c.b16 %v925, %v923
    %v988 = vpack.c.b16 %v926, %v924
    %v989 = vpack.c.b16 %v929, %v927
    %v990 = vpack.c.b16 %v930, %v928
    %v991 = vpack.c.b16 %v933, %v931
    %v992 = vpack.c.b16 %v934, %v932
    %v993 = vpack.c.b16 %v937, %v935
    %v994 = vpack.c.b16 %v938, %v936
    %v995 = vpack.c.b16 %v941, %v939
    %v996 = vpack.c.b16 %v942, %v940
    %v997 = vpack.c.b16 %v945, %v943
    %v998 = vpack.c.b16 %v946, %v944
    %v999 = vpack.c.b16 %v949, %v947
    %v1000 = vpack.c.b16 %v950, %v948
    %v1001 = vpack.c.b16 %v953, %v951
    %v1002 = vpack.c.b16 %v954, %v952
    %v1003 = vpack.c.b16 %v957, %v955
    %v1004 = vpack.c.b16 %v958, %v956
    %v1005 = vpack.c.b16 %v961, %v959
    %v1006 = vpack.c.b16 %v962, %v960
    %v1007 = vpack.c.b16 %v965, %v963
    %v1008 = vpack.c.b16 %v966, %v964
    %v1009 = vpack.c.b16 %v969, %v967
    %v1010 = vpack.c.b16 %v970, %v968
    %v1011 = vpack.c.b16 %v973, %v971
    %v1012 = vpack.c.b16 %v974, %v972
    %v1013 = vpack.c.b16 %v977, %v975
    %v1014 = vpack.c.b16 %v978, %v976
    %v1015 = vpack.c.b16 %v981, %v979
    %v1016 = vpack.c.b16 %v982, %v980
    %v1017 = vpack.c.b16 %v985, %v983
    %v1018 = vpack.c.b16 %v986, %v984
    %1051 = vmatprep.subr.bf16.mxu0 %v1002
    %1052 = vmatpush1.bf16.msra.mxu0 %v1001
    %1053 = vmatprep.subr.bf16.mxu0 %v1000
    %1054 = vmatpush1.bf16.msra.mxu0 %v999
    %1055 = vmatprep.subr.bf16.mxu0 %v998
    %1056 = vmatpush1.bf16.msra.mxu0 %v997
    %1057 = vmatprep.subr.bf16.mxu0 %v996
    %1058 = vmatpush1.bf16.msra.mxu0 %v995
    %1059 = vmatprep.subr.bf16.mxu0 %v994
    %1060 = vmatpush1.bf16.msra.mxu0 %v993
    %1061 = vmatprep.subr.bf16.mxu0 %v992
    %1062 = vmatpush1.bf16.msra.mxu0 %v991
    %1063 = vmatprep.subr.bf16.mxu0 %v990
    %1064 = vmatpush1.bf16.msra.mxu0 %v989
    %1065 = vmatprep.subr.bf16.mxu0 %v988
    %1066 = vmatpush1.bf16.msra.mxu0 %v987
    %1067 = vmatprep.subr.bf16.mxu0 %v1018
    %1068 = vmatpush2.bf16.msra.mxu0 %v1017
    %1069 = vmatprep.subr.bf16.mxu0 %v1016
    %1070 = vmatpush2.bf16.msra.mxu0 %v1015
    %1071 = vmatprep.subr.bf16.mxu0 %v1014
    %1072 = vmatpush2.bf16.msra.mxu0 %v1013
    %1073 = vmatprep.subr.bf16.mxu0 %v1012
    %1074 = vmatpush2.bf16.msra.mxu0 %v1011
    %1075 = vmatprep.subr.bf16.mxu0 %v1010
    %1076 = vmatpush2.bf16.msra.mxu0 %v1009
    %1077 = vmatprep.subr.bf16.mxu0 %v1008
    %1078 = vmatpush2.bf16.msra.mxu0 %v1007
    %1079 = vmatprep.subr.bf16.mxu0 %v1006
    %1080 = vmatpush2.bf16.msra.mxu0 %v1005
    %1081 = vmatprep.subr.bf16.mxu0 %v1004
    %1082 = vmatpush2.bf16.msra.mxu0 %v1003
    %1083 = vmatprep.mubr.bf16.mxu0 %v390
    %1084 = vmatmul.mubr.bf16.gmra.mxu0 %v389
    %v1085 = vpop.f32.mrf.mxu0
    %v1086 = vadd.f32 %v884, %v1085
    %v1087 = vpop.f32.mrf.mxu0
    %v1088 = vadd.f32 %v888, %v1087
    %v1089 = vpop.f32.mrf.mxu0
    %v1090 = vpop.f32.mrf.mxu0
    %1091 = vdwg.mxu0
    %v1092 = vmul.f32 %v839, %v1086
    %v1093 = vmul.f32 %v841, %v1088
    %v1094 = vadd.f32 %v596, %v1092
    %v1095 = vadd.f32 %v597, %v1093
    %s1096 = scalar_lea.vmem [#allocation7], 512
    %v1097 = vld [vmem:[%s1096] sm:$0xff]
    %v1098 = vld [vmem:[%s1096 + $0x8] sm:$0xff]
    %v1099 = vld [vmem:[%s1096 + $0x10] sm:$0xff]
    %v1100 = vld [vmem:[%s1096 + $0x18] sm:$0xff]
    %v1101 = vld [vmem:[%s1096 + $0x20] sm:$0xff]
    %v1102 = vld [vmem:[%s1096 + $0x28] sm:$0xff]
    %v1103 = vld [vmem:[%s1096 + $0x30] sm:$0xff]
    %v1104 = vld [vmem:[%s1096 + $0x38] sm:$0xff]
    %v1105 = vld [vmem:[%s1096 + $0x40] sm:$0xff]
    %v1106 = vld [vmem:[%s1096 + $0x48] sm:$0xff]
    %v1107 = vld [vmem:[%s1096 + $0x50] sm:$0xff]
    %v1108 = vld [vmem:[%s1096 + $0x58] sm:$0xff]
    %v1109 = vld [vmem:[%s1096 + $0x60] sm:$0xff]
    %v1110 = vld [vmem:[%s1096 + $0x68] sm:$0xff]
    %v1111 = vld [vmem:[%s1096 + $0x70] sm:$0xff]
    %v1112 = vld [vmem:[%s1096 + $0x78] sm:$0xff]
    %v1113 = vld [vmem:[%s1096 + $0x80] sm:$0xff]
    %v1114 = vld [vmem:[%s1096 + $0x88] sm:$0xff]
    %v1115 = vld [vmem:[%s1096 + $0x90] sm:$0xff]
    %v1116 = vld [vmem:[%s1096 + $0x98] sm:$0xff]
    %v1117 = vld [vmem:[%s1096 + $0xa0] sm:$0xff]
    %v1118 = vld [vmem:[%s1096 + $0xa8] sm:$0xff]
    %v1119 = vld [vmem:[%s1096 + $0xb0] sm:$0xff]
    %v1120 = vld [vmem:[%s1096 + $0xb8] sm:$0xff]
    %v1121 = vld [vmem:[%s1096 + $0xc0] sm:$0xff]
    %v1122 = vld [vmem:[%s1096 + $0xc8] sm:$0xff]
    %v1123 = vld [vmem:[%s1096 + $0xd0] sm:$0xff]
    %v1124 = vld [vmem:[%s1096 + $0xd8] sm:$0xff]
    %v1125 = vld [vmem:[%s1096 + $0xe0] sm:$0xff]
    %v1126 = vld [vmem:[%s1096 + $0xe8] sm:$0xff]
    %v1127 = vld [vmem:[%s1096 + $0xf0] sm:$0xff]
    %v1128 = vld [vmem:[%s1096 + $0xf8] sm:$0xff]
    %s1129 = scalar_lea.vmem [#allocation8], 4
    %v1130 = vld [vmem:[%s1129] sm:$0x3]
    %v1132 = vlaneseq
    %v1133 = vshrl.u32 %v1132, 7
    %v1134 = vsub.s32 0, %v1133
    %v1135 = vrot.slane %v1130, %v1134
    %v1136 = vlaneseq
    %v1137 = vshrl.u32 %v1136, 7
    %v1138 = vsub.s32 1, %v1137
    %v1139 = vrot.slane %v1130, %v1138
    %v1174 = vunpack.c.l.b16 %v1097
    %v1175 = vunpack.c.h.b16 %v1097
    %v1176 = vunpack.c.l.b16 %v1098
    %v1177 = vunpack.c.h.b16 %v1098
    %v1178 = vunpack.c.l.b16 %v1099
    %v1179 = vunpack.c.h.b16 %v1099
    %v1180 = vunpack.c.l.b16 %v1100
    %v1181 = vunpack.c.h.b16 %v1100
    %v1182 = vunpack.c.l.b16 %v1101
    %v1183 = vunpack.c.h.b16 %v1101
    %v1184 = vunpack.c.l.b16 %v1102
    %v1185 = vunpack.c.h.b16 %v1102
    %v1186 = vunpack.c.l.b16 %v1103
    %v1187 = vunpack.c.h.b16 %v1103
    %v1188 = vunpack.c.l.b16 %v1104
    %v1189 = vunpack.c.h.b16 %v1104
    %v1190 = vunpack.c.l.b16 %v1105
    %v1191 = vunpack.c.h.b16 %v1105
    %v1192 = vunpack.c.l.b16 %v1106
    %v1193 = vunpack.c.h.b16 %v1106
    %v1194 = vunpack.c.l.b16 %v1107
    %v1195 = vunpack.c.h.b16 %v1107
    %v1196 = vunpack.c.l.b16 %v1108
    %v1197 = vunpack.c.h.b16 %v1108
    %v1198 = vunpack.c.l.b16 %v1109
    %v1199 = vunpack.c.h.b16 %v1109
    %v1200 = vunpack.c.l.b16 %v1110
    %v1201 = vunpack.c.h.b16 %v1110
    %v1202 = vunpack.c.l.b16 %v1111
    %v1203 = vunpack.c.h.b16 %v1111
    %v1204 = vunpack.c.l.b16 %v1112
    %v1205 = vunpack.c.h.b16 %v1112
    %v1206 = vunpack.c.l.b16 %v1113
    %v1207 = vunpack.c.h.b16 %v1113
    %v1208 = vunpack.c.l.b16 %v1114
    %v1209 = vunpack.c.h.b16 %v1114
    %v1210 = vunpack.c.l.b16 %v1115
    %v1211 = vunpack.c.h.b16 %v1115
    %v1212 = vunpack.c.l.b16 %v1116
    %v1213 = vunpack.c.h.b16 %v1116
    %v1214 = vunpack.c.l.b16 %v1117
    %v1215 = vunpack.c.h.b16 %v1117
    %v1216 = vunpack.c.l.b16 %v1118
    %v1217 = vunpack.c.h.b16 %v1118
    %v1218 = vunpack.c.l.b16 %v1119
    %v1219 = vunpack.c.h.b16 %v1119
    %v1220 = vunpack.c.l.b16 %v1120
    %v1221 = vunpack.c.h.b16 %v1120
    %v1222 = vunpack.c.l.b16 %v1121
    %v1223 = vunpack.c.h.b16 %v1121
    %v1224 = vunpack.c.l.b16 %v1122
    %v1225 = vunpack.c.h.b16 %v1122
    %v1226 = vunpack.c.l.b16 %v1123
    %v1227 = vunpack.c.h.b16 %v1123
    %v1228 = vunpack.c.l.b16 %v1124
    %v1229 = vunpack.c.h.b16 %v1124
    %v1230 = vunpack.c.l.b16 %v1125
    %v1231 = vunpack.c.h.b16 %v1125
    %v1232 = vunpack.c.l.b16 %v1126
    %v1233 = vunpack.c.h.b16 %v1126
    %v1234 = vunpack.c.l.b16 %v1127
    %v1235 = vunpack.c.h.b16 %v1127
    %v1236 = vunpack.c.l.b16 %v1128
    %v1237 = vunpack.c.h.b16 %v1128
    %v1238 = vpack.c.b16 %v1176, %v1174
    %v1239 = vpack.c.b16 %v1177, %v1175
    %v1240 = vpack.c.b16 %v1180, %v1178
    %v1241 = vpack.c.b16 %v1181, %v1179
    %v1242 = vpack.c.b16 %v1184, %v1182
    %v1243 = vpack.c.b16 %v1185, %v1183
    %v1244 = vpack.c.b16 %v1188, %v1186
    %v1245 = vpack.c.b16 %v1189, %v1187
    %v1246 = vpack.c.b16 %v1192, %v1190
    %v1247 = vpack.c.b16 %v1193, %v1191
    %v1248 = vpack.c.b16 %v1196, %v1194
    %v1249 = vpack.c.b16 %v1197, %v1195
    %v1250 = vpack.c.b16 %v1200, %v1198
    %v1251 = vpack.c.b16 %v1201, %v1199
    %v1252 = vpack.c.b16 %v1204, %v1202
    %v1253 = vpack.c.b16 %v1205, %v1203
    %v1254 = vpack.c.b16 %v1208, %v1206
    %v1255 = vpack.c.b16 %v1209, %v1207
    %v1256 = vpack.c.b16 %v1212, %v1210
    %v1257 = vpack.c.b16 %v1213, %v1211
    %v1258 = vpack.c.b16 %v1216, %v1214
    %v1259 = vpack.c.b16 %v1217, %v1215
    %v1260 = vpack.c.b16 %v1220, %v1218
    %v1261 = vpack.c.b16 %v1221, %v1219
    %v1262 = vpack.c.b16 %v1224, %v1222
    %v1263 = vpack.c.b16 %v1225, %v1223
    %v1264 = vpack.c.b16 %v1228, %v1226
    %v1265 = vpack.c.b16 %v1229, %v1227
    %v1266 = vpack.c.b16 %v1232, %v1230
    %v1267 = vpack.c.b16 %v1233, %v1231
    %v1268 = vpack.c.b16 %v1236, %v1234
    %v1269 = vpack.c.b16 %v1237, %v1235
    %1302 = vmatprep.subr.bf16.mxu0 %v1253
    %1303 = vmatpush1.bf16.msra.mxu0 %v1252
    %1304 = vmatprep.subr.bf16.mxu0 %v1251
    %1305 = vmatpush1.bf16.msra.mxu0 %v1250
    %1306 = vmatprep.subr.bf16.mxu0 %v1249
    %1307 = vmatpush1.bf16.msra.mxu0 %v1248
    %1308 = vmatprep.subr.bf16.mxu0 %v1247
    %1309 = vmatpush1.bf16.msra.mxu0 %v1246
    %1310 = vmatprep.subr.bf16.mxu0 %v1245
    %1311 = vmatpush1.bf16.msra.mxu0 %v1244
    %1312 = vmatprep.subr.bf16.mxu0 %v1243
    %1313 = vmatpush1.bf16.msra.mxu0 %v1242
    %1314 = vmatprep.subr.bf16.mxu0 %v1241
    %1315 = vmatpush1.bf16.msra.mxu0 %v1240
    %1316 = vmatprep.subr.bf16.mxu0 %v1239
    %1317 = vmatpush1.bf16.msra.mxu0 %v1238
    %1318 = vmatprep.subr.bf16.mxu0 %v1269
    %1319 = vmatpush2.bf16.msra.mxu0 %v1268
    %1320 = vmatprep.subr.bf16.mxu0 %v1267
    %1321 = vmatpush2.bf16.msra.mxu0 %v1266
    %1322 = vmatprep.subr.bf16.mxu0 %v1265
    %1323 = vmatpush2.bf16.msra.mxu0 %v1264
    %1324 = vmatprep.subr.bf16.mxu0 %v1263
    %1325 = vmatpush2.bf16.msra.mxu0 %v1262
    %1326 = vmatprep.subr.bf16.mxu0 %v1261
    %1327 = vmatpush2.bf16.msra.mxu0 %v1260
    %1328 = vmatprep.subr.bf16.mxu0 %v1259
    %1329 = vmatpush2.bf16.msra.mxu0 %v1258
    %1330 = vmatprep.subr.bf16.mxu0 %v1257
    %1331 = vmatpush2.bf16.msra.mxu0 %v1256
    %1332 = vmatprep.subr.bf16.mxu0 %v1255
    %1333 = vmatpush2.bf16.msra.mxu0 %v1254
    %1334 = vmatprep.mubr.bf16.mxu0 %v138
    %1335 = vmatmul.mubr.bf16.gmra.mxu0 %v137
    %v1336 = vpop.f32.mrf.mxu0
    %v1337 = vadd.f32 %v1135, %v1336
    %v1338 = vpop.f32.mrf.mxu0
    %v1339 = vadd.f32 %v1139, %v1338
    %v1340 = vpop.f32.mrf.mxu0
    %v1341 = vpop.f32.mrf.mxu0
    %1342 = vdwg.mxu0
    %s1343 = scalar_lea.vmem [#allocation10], 512
    %v1344 = vld [vmem:[%s1343] sm:$0xff]
    %v1345 = vld [vmem:[%s1343 + $0x8] sm:$0xff]
    %v1346 = vld [vmem:[%s1343 + $0x10] sm:$0xff]
    %v1347 = vld [vmem:[%s1343 + $0x18] sm:$0xff]
    %v1348 = vld [vmem:[%s1343 + $0x20] sm:$0xff]
    %v1349 = vld [vmem:[%s1343 + $0x28] sm:$0xff]
    %v1350 = vld [vmem:[%s1343 + $0x30] sm:$0xff]
    %v1351 = vld [vmem:[%s1343 + $0x38] sm:$0xff]
    %v1352 = vld [vmem:[%s1343 + $0x40] sm:$0xff]
    %v1353 = vld [vmem:[%s1343 + $0x48] sm:$0xff]
    %v1354 = vld [vmem:[%s1343 + $0x50] sm:$0xff]
    %v1355 = vld [vmem:[%s1343 + $0x58] sm:$0xff]
    %v1356 = vld [vmem:[%s1343 + $0x60] sm:$0xff]
    %v1357 = vld [vmem:[%s1343 + $0x68] sm:$0xff]
    %v1358 = vld [vmem:[%s1343 + $0x70] sm:$0xff]
    %v1359 = vld [vmem:[%s1343 + $0x78] sm:$0xff]
    %v1360 = vld [vmem:[%s1343 + $0x80] sm:$0xff]
    %v1361 = vld [vmem:[%s1343 + $0x88] sm:$0xff]
    %v1362 = vld [vmem:[%s1343 + $0x90] sm:$0xff]
    %v1363 = vld [vmem:[%s1343 + $0x98] sm:$0xff]
    %v1364 = vld [vmem:[%s1343 + $0xa0] sm:$0xff]
    %v1365 = vld [vmem:[%s1343 + $0xa8] sm:$0xff]
    %v1366 = vld [vmem:[%s1343 + $0xb0] sm:$0xff]
    %v1367 = vld [vmem:[%s1343 + $0xb8] sm:$0xff]
    %v1368 = vld [vmem:[%s1343 + $0xc0] sm:$0xff]
    %v1369 = vld [vmem:[%s1343 + $0xc8] sm:$0xff]
    %v1370 = vld [vmem:[%s1343 + $0xd0] sm:$0xff]
    %v1371 = vld [vmem:[%s1343 + $0xd8] sm:$0xff]
    %v1372 = vld [vmem:[%s1343 + $0xe0] sm:$0xff]
    %v1373 = vld [vmem:[%s1343 + $0xe8] sm:$0xff]
    %v1374 = vld [vmem:[%s1343 + $0xf0] sm:$0xff]
    %v1375 = vld [vmem:[%s1343 + $0xf8] sm:$0xff]
    %s1376 = scalar_lea.vmem %s5, 4
    %v1377 = vld [vmem:[%s1376] sm:$0x3]
    %v1379 = vlaneseq
    %v1380 = vshrl.u32 %v1379, 7
    %v1381 = vsub.s32 0, %v1380
    %v1382 = vrot.slane %v1377, %v1381
    %v1383 = vlaneseq
    %v1384 = vshrl.u32 %v1383, 7
    %v1385 = vsub.s32 1, %v1384
    %v1386 = vrot.slane %v1377, %v1385
    %v1421 = vunpack.c.l.b16 %v1344
    %v1422 = vunpack.c.h.b16 %v1344
    %v1423 = vunpack.c.l.b16 %v1345
    %v1424 = vunpack.c.h.b16 %v1345
    %v1425 = vunpack.c.l.b16 %v1346
    %v1426 = vunpack.c.h.b16 %v1346
    %v1427 = vunpack.c.l.b16 %v1347
    %v1428 = vunpack.c.h.b16 %v1347
    %v1429 = vunpack.c.l.b16 %v1348
    %v1430 = vunpack.c.h.b16 %v1348
    %v1431 = vunpack.c.l.b16 %v1349
    %v1432 = vunpack.c.h.b16 %v1349
    %v1433 = vunpack.c.l.b16 %v1350
    %v1434 = vunpack.c.h.b16 %v1350
    %v1435 = vunpack.c.l.b16 %v1351
    %v1436 = vunpack.c.h.b16 %v1351
    %v1437 = vunpack.c.l.b16 %v1352
    %v1438 = vunpack.c.h.b16 %v1352
    %v1439 = vunpack.c.l.b16 %v1353
    %v1440 = vunpack.c.h.b16 %v1353
    %v1441 = vunpack.c.l.b16 %v1354
    %v1442 = vunpack.c.h.b16 %v1354
    %v1443 = vunpack.c.l.b16 %v1355
    %v1444 = vunpack.c.h.b16 %v1355
    %v1445 = vunpack.c.l.b16 %v1356
    %v1446 = vunpack.c.h.b16 %v1356
    %v1447 = vunpack.c.l.b16 %v1357
    %v1448 = vunpack.c.h.b16 %v1357
    %v1449 = vunpack.c.l.b16 %v1358
    %v1450 = vunpack.c.h.b16 %v1358
    %v1451 = vunpack.c.l.b16 %v1359
    %v1452 = vunpack.c.h.b16 %v1359
    %v1453 = vunpack.c.l.b16 %v1360
    %v1454 = vunpack.c.h.b16 %v1360
    %v1455 = vunpack.c.l.b16 %v1361
    %v1456 = vunpack.c.h.b16 %v1361
    %v1457 = vunpack.c.l.b16 %v1362
    %v1458 = vunpack.c.h.b16 %v1362
    %v1459 = vunpack.c.l.b16 %v1363
    %v1460 = vunpack.c.h.b16 %v1363
    %v1461 = vunpack.c.l.b16 %v1364
    %v1462 = vunpack.c.h.b16 %v1364
    %v1463 = vunpack.c.l.b16 %v1365
    %v1464 = vunpack.c.h.b16 %v1365
    %v1465 = vunpack.c.l.b16 %v1366
    %v1466 = vunpack.c.h.b16 %v1366
    %v1467 = vunpack.c.l.b16 %v1367
    %v1468 = vunpack.c.h.b16 %v1367
    %v1469 = vunpack.c.l.b16 %v1368
    %v1470 = vunpack.c.h.b16 %v1368
    %v1471 = vunpack.c.l.b16 %v1369
    %v1472 = vunpack.c.h.b16 %v1369
    %v1473 = vunpack.c.l.b16 %v1370
    %v1474 = vunpack.c.h.b16 %v1370
    %v1475 = vunpack.c.l.b16 %v1371
    %v1476 = vunpack.c.h.b16 %v1371
    %v1477 = vunpack.c.l.b16 %v1372
    %v1478 = vunpack.c.h.b16 %v1372
    %v1479 = vunpack.c.l.b16 %v1373
    %v1480 = vunpack.c.h.b16 %v1373
    %v1481 = vunpack.c.l.b16 %v1374
    %v1482 = vunpack.c.h.b16 %v1374
    %v1483 = vunpack.c.l.b16 %v1375
    %v1484 = vunpack.c.h.b16 %v1375
    %v1485 = vpack.c.b16 %v1423, %v1421
    %v1486 = vpack.c.b16 %v1424, %v1422
    %v1487 = vpack.c.b16 %v1427, %v1425
    %v1488 = vpack.c.b16 %v1428, %v1426
    %v1489 = vpack.c.b16 %v1431, %v1429
    %v1490 = vpack.c.b16 %v1432, %v1430
    %v1491 = vpack.c.b16 %v1435, %v1433
    %v1492 = vpack.c.b16 %v1436, %v1434
    %v1493 = vpack.c.b16 %v1439, %v1437
    %v1494 = vpack.c.b16 %v1440, %v1438
    %v1495 = vpack.c.b16 %v1443, %v1441
    %v1496 = vpack.c.b16 %v1444, %v1442
    %v1497 = vpack.c.b16 %v1447, %v1445
    %v1498 = vpack.c.b16 %v1448, %v1446
    %v1499 = vpack.c.b16 %v1451, %v1449
    %v1500 = vpack.c.b16 %v1452, %v1450
    %v1501 = vpack.c.b16 %v1455, %v1453
    %v1502 = vpack.c.b16 %v1456, %v1454
    %v1503 = vpack.c.b16 %v1459, %v1457
    %v1504 = vpack.c.b16 %v1460, %v1458
    %v1505 = vpack.c.b16 %v1463, %v1461
    %v1506 = vpack.c.b16 %v1464, %v1462
    %v1507 = vpack.c.b16 %v1467, %v1465
    %v1508 = vpack.c.b16 %v1468, %v1466
    %v1509 = vpack.c.b16 %v1471, %v1469
    %v1510 = vpack.c.b16 %v1472, %v1470
    %v1511 = vpack.c.b16 %v1475, %v1473
    %v1512 = vpack.c.b16 %v1476, %v1474
    %v1513 = vpack.c.b16 %v1479, %v1477
    %v1514 = vpack.c.b16 %v1480, %v1478
    %v1515 = vpack.c.b16 %v1483, %v1481
    %v1516 = vpack.c.b16 %v1484, %v1482
    %1549 = vmatprep.subr.bf16.mxu0 %v1500
    %1550 = vmatpush1.bf16.msra.mxu0 %v1499
    %1551 = vmatprep.subr.bf16.mxu0 %v1498
    %1552 = vmatpush1.bf16.msra.mxu0 %v1497
    %1553 = vmatprep.subr.bf16.mxu0 %v1496
    %1554 = vmatpush1.bf16.msra.mxu0 %v1495
    %1555 = vmatprep.subr.bf16.mxu0 %v1494
    %1556 = vmatpush1.bf16.msra.mxu0 %v1493
    %1557 = vmatprep.subr.bf16.mxu0 %v1492
    %1558 = vmatpush1.bf16.msra.mxu0 %v1491
    %1559 = vmatprep.subr.bf16.mxu0 %v1490
    %1560 = vmatpush1.bf16.msra.mxu0 %v1489
    %1561 = vmatprep.subr.bf16.mxu0 %v1488
    %1562 = vmatpush1.bf16.msra.mxu0 %v1487
    %1563 = vmatprep.subr.bf16.mxu0 %v1486
    %1564 = vmatpush1.bf16.msra.mxu0 %v1485
    %1565 = vmatprep.subr.bf16.mxu0 %v1516
    %1566 = vmatpush2.bf16.msra.mxu0 %v1515
    %1567 = vmatprep.subr.bf16.mxu0 %v1514
    %1568 = vmatpush2.bf16.msra.mxu0 %v1513
    %1569 = vmatprep.subr.bf16.mxu0 %v1512
    %1570 = vmatpush2.bf16.msra.mxu0 %v1511
    %1571 = vmatprep.subr.bf16.mxu0 %v1510
    %1572 = vmatpush2.bf16.msra.mxu0 %v1509
    %1573 = vmatprep.subr.bf16.mxu0 %v1508
    %1574 = vmatpush2.bf16.msra.mxu0 %v1507
    %1575 = vmatprep.subr.bf16.mxu0 %v1506
    %1576 = vmatpush2.bf16.msra.mxu0 %v1505
    %1577 = vmatprep.subr.bf16.mxu0 %v1504
    %1578 = vmatpush2.bf16.msra.mxu0 %v1503
    %1579 = vmatprep.subr.bf16.mxu0 %v1502
    %1580 = vmatpush2.bf16.msra.mxu0 %v1501
    %1581 = vmatprep.mubr.bf16.mxu0 %v390
    %1582 = vmatmul.mubr.bf16.gmra.mxu0 %v389
    %v1583 = vpop.f32.mrf.mxu0
    %v1584 = vadd.f32 %v1382, %v1583
    %v1585 = vpop.f32.mrf.mxu0
    %v1586 = vadd.f32 %v1386, %v1585
    %v1587 = vpop.f32.mrf.mxu0
    %v1588 = vpop.f32.mrf.mxu0
    %1589 = vdwg.mxu0
    %v1590 = vmul.f32 %v1337, %v1584
    %v1591 = vmul.f32 %v1339, %v1586
    %v1592 = vadd.f32 %v1094, %v1590
    %v1593 = vadd.f32 %v1095, %v1591
    %s1594 = scalar_lea.vmem [#allocation7], 768
    %v1595 = vld [vmem:[%s1594] sm:$0xff]
    %v1596 = vld [vmem:[%s1594 + $0x8] sm:$0xff]
    %v1597 = vld [vmem:[%s1594 + $0x10] sm:$0xff]
    %v1598 = vld [vmem:[%s1594 + $0x18] sm:$0xff]
    %v1599 = vld [vmem:[%s1594 + $0x20] sm:$0xff]
    %v1600 = vld [vmem:[%s1594 + $0x28] sm:$0xff]
    %v1601 = vld [vmem:[%s1594 + $0x30] sm:$0xff]
    %v1602 = vld [vmem:[%s1594 + $0x38] sm:$0xff]
    %v1603 = vld [vmem:[%s1594 + $0x40] sm:$0xff]
    %v1604 = vld [vmem:[%s1594 + $0x48] sm:$0xff]
    %v1605 = vld [vmem:[%s1594 + $0x50] sm:$0xff]
    %v1606 = vld [vmem:[%s1594 + $0x58] sm:$0xff]
    %v1607 = vld [vmem:[%s1594 + $0x60] sm:$0xff]
    %v1608 = vld [vmem:[%s1594 + $0x68] sm:$0xff]
    %v1609 = vld [vmem:[%s1594 + $0x70] sm:$0xff]
    %v1610 = vld [vmem:[%s1594 + $0x78] sm:$0xff]
    %v1611 = vld [vmem:[%s1594 + $0x80] sm:$0xff]
    %v1612 = vld [vmem:[%s1594 + $0x88] sm:$0xff]
    %v1613 = vld [vmem:[%s1594 + $0x90] sm:$0xff]
    %v1614 = vld [vmem:[%s1594 + $0x98] sm:$0xff]
    %v1615 = vld [vmem:[%s1594 + $0xa0] sm:$0xff]
    %v1616 = vld [vmem:[%s1594 + $0xa8] sm:$0xff]
    %v1617 = vld [vmem:[%s1594 + $0xb0] sm:$0xff]
    %v1618 = vld [vmem:[%s1594 + $0xb8] sm:$0xff]
    %v1619 = vld [vmem:[%s1594 + $0xc0] sm:$0xff]
    %v1620 = vld [vmem:[%s1594 + $0xc8] sm:$0xff]
    %v1621 = vld [vmem:[%s1594 + $0xd0] sm:$0xff]
    %v1622 = vld [vmem:[%s1594 + $0xd8] sm:$0xff]
    %v1623 = vld [vmem:[%s1594 + $0xe0] sm:$0xff]
    %v1624 = vld [vmem:[%s1594 + $0xe8] sm:$0xff]
    %v1625 = vld [vmem:[%s1594 + $0xf0] sm:$0xff]
    %v1626 = vld [vmem:[%s1594 + $0xf8] sm:$0xff]
    %s1627 = scalar_lea.vmem [#allocation8], 6
    %v1628 = vld [vmem:[%s1627] sm:$0x3]
    %v1630 = vlaneseq
    %v1631 = vshrl.u32 %v1630, 7
    %v1632 = vsub.s32 0, %v1631
    %v1633 = vrot.slane %v1628, %v1632
    %v1634 = vlaneseq
    %v1635 = vshrl.u32 %v1634, 7
    %v1636 = vsub.s32 1, %v1635
    %v1637 = vrot.slane %v1628, %v1636
    %v1672 = vunpack.c.l.b16 %v1595
    %v1673 = vunpack.c.h.b16 %v1595
    %v1674 = vunpack.c.l.b16 %v1596
    %v1675 = vunpack.c.h.b16 %v1596
    %v1676 = vunpack.c.l.b16 %v1597
    %v1677 = vunpack.c.h.b16 %v1597
    %v1678 = vunpack.c.l.b16 %v1598
    %v1679 = vunpack.c.h.b16 %v1598
    %v1680 = vunpack.c.l.b16 %v1599
    %v1681 = vunpack.c.h.b16 %v1599
    %v1682 = vunpack.c.l.b16 %v1600
    %v1683 = vunpack.c.h.b16 %v1600
    %v1684 = vunpack.c.l.b16 %v1601
    %v1685 = vunpack.c.h.b16 %v1601
    %v1686 = vunpack.c.l.b16 %v1602
    %v1687 = vunpack.c.h.b16 %v1602
    %v1688 = vunpack.c.l.b16 %v1603
    %v1689 = vunpack.c.h.b16 %v1603
    %v1690 = vunpack.c.l.b16 %v1604
    %v1691 = vunpack.c.h.b16 %v1604
    %v1692 = vunpack.c.l.b16 %v1605
    %v1693 = vunpack.c.h.b16 %v1605
    %v1694 = vunpack.c.l.b16 %v1606
    %v1695 = vunpack.c.h.b16 %v1606
    %v1696 = vunpack.c.l.b16 %v1607
    %v1697 = vunpack.c.h.b16 %v1607
    %v1698 = vunpack.c.l.b16 %v1608
    %v1699 = vunpack.c.h.b16 %v1608
    %v1700 = vunpack.c.l.b16 %v1609
    %v1701 = vunpack.c.h.b16 %v1609
    %v1702 = vunpack.c.l.b16 %v1610
    %v1703 = vunpack.c.h.b16 %v1610
    %v1704 = vunpack.c.l.b16 %v1611
    %v1705 = vunpack.c.h.b16 %v1611
    %v1706 = vunpack.c.l.b16 %v1612
    %v1707 = vunpack.c.h.b16 %v1612
    %v1708 = vunpack.c.l.b16 %v1613
    %v1709 = vunpack.c.h.b16 %v1613
    %v1710 = vunpack.c.l.b16 %v1614
    %v1711 = vunpack.c.h.b16 %v1614
    %v1712 = vunpack.c.l.b16 %v1615
    %v1713 = vunpack.c.h.b16 %v1615
    %v1714 = vunpack.c.l.b16 %v1616
    %v1715 = vunpack.c.h.b16 %v1616
    %v1716 = vunpack.c.l.b16 %v1617
    %v1717 = vunpack.c.h.b16 %v1617
    %v1718 = vunpack.c.l.b16 %v1618
    %v1719 = vunpack.c.h.b16 %v1618
    %v1720 = vunpack.c.l.b16 %v1619
    %v1721 = vunpack.c.h.b16 %v1619
    %v1722 = vunpack.c.l.b16 %v1620
    %v1723 = vunpack.c.h.b16 %v1620
    %v1724 = vunpack.c.l.b16 %v1621
    %v1725 = vunpack.c.h.b16 %v1621
    %v1726 = vunpack.c.l.b16 %v1622
    %v1727 = vunpack.c.h.b16 %v1622
    %v1728 = vunpack.c.l.b16 %v1623
    %v1729 = vunpack.c.h.b16 %v1623
    %v1730 = vunpack.c.l.b16 %v1624
    %v1731 = vunpack.c.h.b16 %v1624
    %v1732 = vunpack.c.l.b16 %v1625
    %v1733 = vunpack.c.h.b16 %v1625
    %v1734 = vunpack.c.l.b16 %v1626
    %v1735 = vunpack.c.h.b16 %v1626
    %v1736 = vpack.c.b16 %v1674, %v1672
    %v1737 = vpack.c.b16 %v1675, %v1673
    %v1738 = vpack.c.b16 %v1678, %v1676
    %v1739 = vpack.c.b16 %v1679, %v1677
    %v1740 = vpack.c.b16 %v1682, %v1680
    %v1741 = vpack.c.b16 %v1683, %v1681
    %v1742 = vpack.c.b16 %v1686, %v1684
    %v1743 = vpack.c.b16 %v1687, %v1685
    %v1744 = vpack.c.b16 %v1690, %v1688
    %v1745 = vpack.c.b16 %v1691, %v1689
    %v1746 = vpack.c.b16 %v1694, %v1692
    %v1747 = vpack.c.b16 %v1695, %v1693
    %v1748 = vpack.c.b16 %v1698, %v1696
    %v1749 = vpack.c.b16 %v1699, %v1697
    %v1750 = vpack.c.b16 %v1702, %v1700
    %v1751 = vpack.c.b16 %v1703, %v1701
    %v1752 = vpack.c.b16 %v1706, %v1704
    %v1753 = vpack.c.b16 %v1707, %v1705
    %v1754 = vpack.c.b16 %v1710, %v1708
    %v1755 = vpack.c.b16 %v1711, %v1709
    %v1756 = vpack.c.b16 %v1714, %v1712
    %v1757 = vpack.c.b16 %v1715, %v1713
    %v1758 = vpack.c.b16 %v1718, %v1716
    %v1759 = vpack.c.b16 %v1719, %v1717
    %v1760 = vpack.c.b16 %v1722, %v1720
    %v1761 = vpack.c.b16 %v1723, %v1721
    %v1762 = vpack.c.b16 %v1726, %v1724
    %v1763 = vpack.c.b16 %v1727, %v1725
    %v1764 = vpack.c.b16 %v1730, %v1728
    %v1765 = vpack.c.b16 %v1731, %v1729
    %v1766 = vpack.c.b16 %v1734, %v1732
    %v1767 = vpack.c.b16 %v1735, %v1733
    %1800 = vmatprep.subr.bf16.mxu0 %v1751
    %1801 = vmatpush1.bf16.msra.mxu0 %v1750
    %1802 = vmatprep.subr.bf16.mxu0 %v1749
    %1803 = vmatpush1.bf16.msra.mxu0 %v1748
    %1804 = vmatprep.subr.bf16.mxu0 %v1747
    %1805 = vmatpush1.bf16.msra.mxu0 %v1746
    %1806 = vmatprep.subr.bf16.mxu0 %v1745
    %1807 = vmatpush1.bf16.msra.mxu0 %v1744
    %1808 = vmatprep.subr.bf16.mxu0 %v1743
    %1809 = vmatpush1.bf16.msra.mxu0 %v1742
    %1810 = vmatprep.subr.bf16.mxu0 %v1741
    %1811 = vmatpush1.bf16.msra.mxu0 %v1740
    %1812 = vmatprep.subr.bf16.mxu0 %v1739
    %1813 = vmatpush1.bf16.msra.mxu0 %v1738
    %1814 = vmatprep.subr.bf16.mxu0 %v1737
    %1815 = vmatpush1.bf16.msra.mxu0 %v1736
    %1816 = vmatprep.subr.bf16.mxu0 %v1767
    %1817 = vmatpush2.bf16.msra.mxu0 %v1766
    %1818 = vmatprep.subr.bf16.mxu0 %v1765
    %1819 = vmatpush2.bf16.msra.mxu0 %v1764
    %1820 = vmatprep.subr.bf16.mxu0 %v1763
    %1821 = vmatpush2.bf16.msra.mxu0 %v1762
    %1822 = vmatprep.subr.bf16.mxu0 %v1761
    %1823 = vmatpush2.bf16.msra.mxu0 %v1760
    %1824 = vmatprep.subr.bf16.mxu0 %v1759
    %1825 = vmatpush2.bf16.msra.mxu0 %v1758
    %1826 = vmatprep.subr.bf16.mxu0 %v1757
    %1827 = vmatpush2.bf16.msra.mxu0 %v1756
    %1828 = vmatprep.subr.bf16.mxu0 %v1755
    %1829 = vmatpush2.bf16.msra.mxu0 %v1754
    %1830 = vmatprep.subr.bf16.mxu0 %v1753
    %1831 = vmatpush2.bf16.msra.mxu0 %v1752
    %1832 = vmatprep.mubr.bf16.mxu0 %v138
    %1833 = vmatmul.mubr.bf16.gmra.mxu0 %v137
    %v1834 = vpop.f32.mrf.mxu0
    %v1835 = vadd.f32 %v1633, %v1834
    %v1836 = vpop.f32.mrf.mxu0
    %v1837 = vadd.f32 %v1637, %v1836
    %v1838 = vpop.f32.mrf.mxu0
    %v1839 = vpop.f32.mrf.mxu0
    %1840 = vdwg.mxu0
    %s1841 = scalar_lea.vmem [#allocation10], 768
    %v1842 = vld [vmem:[%s1841] sm:$0xff]
    %v1843 = vld [vmem:[%s1841 + $0x8] sm:$0xff]
    %v1844 = vld [vmem:[%s1841 + $0x10] sm:$0xff]
    %v1845 = vld [vmem:[%s1841 + $0x18] sm:$0xff]
    %v1846 = vld [vmem:[%s1841 + $0x20] sm:$0xff]
    %v1847 = vld [vmem:[%s1841 + $0x28] sm:$0xff]
    %v1848 = vld [vmem:[%s1841 + $0x30] sm:$0xff]
    %v1849 = vld [vmem:[%s1841 + $0x38] sm:$0xff]
    %v1850 = vld [vmem:[%s1841 + $0x40] sm:$0xff]
    %v1851 = vld [vmem:[%s1841 + $0x48] sm:$0xff]
    %v1852 = vld [vmem:[%s1841 + $0x50] sm:$0xff]
    %v1853 = vld [vmem:[%s1841 + $0x58] sm:$0xff]
    %v1854 = vld [vmem:[%s1841 + $0x60] sm:$0xff]
    %v1855 = vld [vmem:[%s1841 + $0x68] sm:$0xff]
    %v1856 = vld [vmem:[%s1841 + $0x70] sm:$0xff]
    %v1857 = vld [vmem:[%s1841 + $0x78] sm:$0xff]
    %v1858 = vld [vmem:[%s1841 + $0x80] sm:$0xff]
    %v1859 = vld [vmem:[%s1841 + $0x88] sm:$0xff]
    %v1860 = vld [vmem:[%s1841 + $0x90] sm:$0xff]
    %v1861 = vld [vmem:[%s1841 + $0x98] sm:$0xff]
    %v1862 = vld [vmem:[%s1841 + $0xa0] sm:$0xff]
    %v1863 = vld [vmem:[%s1841 + $0xa8] sm:$0xff]
    %v1864 = vld [vmem:[%s1841 + $0xb0] sm:$0xff]
    %v1865 = vld [vmem:[%s1841 + $0xb8] sm:$0xff]
    %v1866 = vld [vmem:[%s1841 + $0xc0] sm:$0xff]
    %v1867 = vld [vmem:[%s1841 + $0xc8] sm:$0xff]
    %v1868 = vld [vmem:[%s1841 + $0xd0] sm:$0xff]
    %v1869 = vld [vmem:[%s1841 + $0xd8] sm:$0xff]
    %v1870 = vld [vmem:[%s1841 + $0xe0] sm:$0xff]
    %v1871 = vld [vmem:[%s1841 + $0xe8] sm:$0xff]
    %v1872 = vld [vmem:[%s1841 + $0xf0] sm:$0xff]
    %v1873 = vld [vmem:[%s1841 + $0xf8] sm:$0xff]
    %s1874 = scalar_lea.vmem %s5, 6
    %v1875 = vld [vmem:[%s1874] sm:$0x3]
    %v1877 = vlaneseq
    %v1878 = vshrl.u32 %v1877, 7
    %v1879 = vsub.s32 0, %v1878
    %v1880 = vrot.slane %v1875, %v1879
    %v1881 = vlaneseq
    %v1882 = vshrl.u32 %v1881, 7
    %v1883 = vsub.s32 1, %v1882
    %v1884 = vrot.slane %v1875, %v1883
    %v1919 = vunpack.c.l.b16 %v1842
    %v1920 = vunpack.c.h.b16 %v1842
    %v1921 = vunpack.c.l.b16 %v1843
    %v1922 = vunpack.c.h.b16 %v1843
    %v1923 = vunpack.c.l.b16 %v1844
    %v1924 = vunpack.c.h.b16 %v1844
    %v1925 = vunpack.c.l.b16 %v1845
    %v1926 = vunpack.c.h.b16 %v1845
    %v1927 = vunpack.c.l.b16 %v1846
    %v1928 = vunpack.c.h.b16 %v1846
    %v1929 = vunpack.c.l.b16 %v1847
    %v1930 = vunpack.c.h.b16 %v1847
    %v1931 = vunpack.c.l.b16 %v1848
    %v1932 = vunpack.c.h.b16 %v1848
    %v1933 = vunpack.c.l.b16 %v1849
    %v1934 = vunpack.c.h.b16 %v1849
    %v1935 = vunpack.c.l.b16 %v1850
    %v1936 = vunpack.c.h.b16 %v1850
    %v1937 = vunpack.c.l.b16 %v1851
    %v1938 = vunpack.c.h.b16 %v1851
    %v1939 = vunpack.c.l.b16 %v1852
    %v1940 = vunpack.c.h.b16 %v1852
    %v1941 = vunpack.c.l.b16 %v1853
    %v1942 = vunpack.c.h.b16 %v1853
    %v1943 = vunpack.c.l.b16 %v1854
    %v1944 = vunpack.c.h.b16 %v1854
    %v1945 = vunpack.c.l.b16 %v1855
    %v1946 = vunpack.c.h.b16 %v1855
    %v1947 = vunpack.c.l.b16 %v1856
    %v1948 = vunpack.c.h.b16 %v1856
    %v1949 = vunpack.c.l.b16 %v1857
    %v1950 = vunpack.c.h.b16 %v1857
    %v1951 = vunpack.c.l.b16 %v1858
    %v1952 = vunpack.c.h.b16 %v1858
    %v1953 = vunpack.c.l.b16 %v1859
    %v1954 = vunpack.c.h.b16 %v1859
    %v1955 = vunpack.c.l.b16 %v1860
    %v1956 = vunpack.c.h.b16 %v1860
    %v1957 = vunpack.c.l.b16 %v1861
    %v1958 = vunpack.c.h.b16 %v1861
    %v1959 = vunpack.c.l.b16 %v1862
    %v1960 = vunpack.c.h.b16 %v1862
    %v1961 = vunpack.c.l.b16 %v1863
    %v1962 = vunpack.c.h.b16 %v1863
    %v1963 = vunpack.c.l.b16 %v1864
    %v1964 = vunpack.c.h.b16 %v1864
    %v1965 = vunpack.c.l.b16 %v1865
    %v1966 = vunpack.c.h.b16 %v1865
    %v1967 = vunpack.c.l.b16 %v1866
    %v1968 = vunpack.c.h.b16 %v1866
    %v1969 = vunpack.c.l.b16 %v1867
    %v1970 = vunpack.c.h.b16 %v1867
    %v1971 = vunpack.c.l.b16 %v1868
    %v1972 = vunpack.c.h.b16 %v1868
    %v1973 = vunpack.c.l.b16 %v1869
    %v1974 = vunpack.c.h.b16 %v1869
    %v1975 = vunpack.c.l.b16 %v1870
    %v1976 = vunpack.c.h.b16 %v1870
    %v1977 = vunpack.c.l.b16 %v1871
    %v1978 = vunpack.c.h.b16 %v1871
    %v1979 = vunpack.c.l.b16 %v1872
    %v1980 = vunpack.c.h.b16 %v1872
    %v1981 = vunpack.c.l.b16 %v1873
    %v1982 = vunpack.c.h.b16 %v1873
    %v1983 = vpack.c.b16 %v1921, %v1919
    %v1984 = vpack.c.b16 %v1922, %v1920
    %v1985 = vpack.c.b16 %v1925, %v1923
    %v1986 = vpack.c.b16 %v1926, %v1924
    %v1987 = vpack.c.b16 %v1929, %v1927
    %v1988 = vpack.c.b16 %v1930, %v1928
    %v1989 = vpack.c.b16 %v1933, %v1931
    %v1990 = vpack.c.b16 %v1934, %v1932
    %v1991 = vpack.c.b16 %v1937, %v1935
    %v1992 = vpack.c.b16 %v1938, %v1936
    %v1993 = vpack.c.b16 %v1941, %v1939
    %v1994 = vpack.c.b16 %v1942, %v1940
    %v1995 = vpack.c.b16 %v1945, %v1943
    %v1996 = vpack.c.b16 %v1946, %v1944
    %v1997 = vpack.c.b16 %v1949, %v1947
    %v1998 = vpack.c.b16 %v1950, %v1948
    %v1999 = vpack.c.b16 %v1953, %v1951
    %v2000 = vpack.c.b16 %v1954, %v1952
    %v2001 = vpack.c.b16 %v1957, %v1955
    %v2002 = vpack.c.b16 %v1958, %v1956
    %v2003 = vpack.c.b16 %v1961, %v1959
    %v2004 = vpack.c.b16 %v1962, %v1960
    %v2005 = vpack.c.b16 %v1965, %v1963
    %v2006 = vpack.c.b16 %v1966, %v1964
    %v2007 = vpack.c.b16 %v1969, %v1967
    %v2008 = vpack.c.b16 %v1970, %v1968
    %v2009 = vpack.c.b16 %v1973, %v1971
    %v2010 = vpack.c.b16 %v1974, %v1972
    %v2011 = vpack.c.b16 %v1977, %v1975
    %v2012 = vpack.c.b16 %v1978, %v1976
    %v2013 = vpack.c.b16 %v1981, %v1979
    %v2014 = vpack.c.b16 %v1982, %v1980
    %2047 = vmatprep.subr.bf16.mxu0 %v1998
    %2048 = vmatpush1.bf16.msra.mxu0 %v1997
    %2049 = vmatprep.subr.bf16.mxu0 %v1996
    %2050 = vmatpush1.bf16.msra.mxu0 %v1995
    %2051 = vmatprep.subr.bf16.mxu0 %v1994
    %2052 = vmatpush1.bf16.msra.mxu0 %v1993
    %2053 = vmatprep.subr.bf16.mxu0 %v1992
    %2054 = vmatpush1.bf16.msra.mxu0 %v1991
    %2055 = vmatprep.subr.bf16.mxu0 %v1990
    %2056 = vmatpush1.bf16.msra.mxu0 %v1989
    %2057 = vmatprep.subr.bf16.mxu0 %v1988
    %2058 = vmatpush1.bf16.msra.mxu0 %v1987
    %2059 = vmatprep.subr.bf16.mxu0 %v1986
    %2060 = vmatpush1.bf16.msra.mxu0 %v1985
    %2061 = vmatprep.subr.bf16.mxu0 %v1984
    %2062 = vmatpush1.bf16.msra.mxu0 %v1983
    %2063 = vmatprep.subr.bf16.mxu0 %v2014
    %2064 = vmatpush2.bf16.msra.mxu0 %v2013
    %2065 = vmatprep.subr.bf16.mxu0 %v2012
    %2066 = vmatpush2.bf16.msra.mxu0 %v2011
    %2067 = vmatprep.subr.bf16.mxu0 %v2010
    %2068 = vmatpush2.bf16.msra.mxu0 %v2009
    %2069 = vmatprep.subr.bf16.mxu0 %v2008
    %2070 = vmatpush2.bf16.msra.mxu0 %v2007
    %2071 = vmatprep.subr.bf16.mxu0 %v2006
    %2072 = vmatpush2.bf16.msra.mxu0 %v2005
    %2073 = vmatprep.subr.bf16.mxu0 %v2004
    %2074 = vmatpush2.bf16.msra.mxu0 %v2003
    %2075 = vmatprep.subr.bf16.mxu0 %v2002
    %2076 = vmatpush2.bf16.msra.mxu0 %v2001
    %2077 = vmatprep.subr.bf16.mxu0 %v2000
    %2078 = vmatpush2.bf16.msra.mxu0 %v1999
    %2079 = vmatprep.mubr.bf16.mxu0 %v390
    %2080 = vmatmul.mubr.bf16.gmra.mxu0 %v389
    %v2081 = vpop.f32.mrf.mxu0
    %v2082 = vadd.f32 %v1880, %v2081
    %v2083 = vpop.f32.mrf.mxu0
    %v2084 = vadd.f32 %v1884, %v2083
    %v2085 = vpop.f32.mrf.mxu0
    %v2086 = vpop.f32.mrf.mxu0
    %2087 = vdwg.mxu0
    %v2088 = vmul.f32 %v1835, %v2082
    %v2089 = vmul.f32 %v1837, %v2084
    %v2090 = vadd.f32 %v1592, %v2088
    %v2091 = vadd.f32 %v1593, %v2089
    %v2092 = vmul.f32 %v2090, 0.25
    %v2093 = vmul.f32 %v2091, 0.25
    %v2094 = vmul.f32 %v2092, %v2092
    %v2095 = vmul.f32 %v2093, %v2093
    %v2096 = vadd.f32 %v2094, %v2095
    %2097 = vadd.xlane.f32.xlu0 %v2096
    %v2098 = vpop.xlane.xlu0 %2097
    %v2099 = vmax.f32 %v2098, 1e-24
    %v2100 = vrsqrt.pop %v2099
    %v2101 = vmul.f32 %v2092, %v2100
    %v2102 = vmul.f32 %v2093, %v2100
    %2103 = vst [vmem:[#allocation11] sm:$0xff] %v2101
    %2104 = vst [vmem:[#allocation11 + $0x8] sm:$0xff] %v2102
    // Predicated region
    $region46: #{tpu_custom_call.1} parent=1 // pred_check
      _
    $region47: #{tpu_custom_call.1} parent=1 // pred_check_branch
      %2106 = sbr.rel (0) target = $region49
    $region48: #{tpu_custom_call.1} parent=1 // pred_region
      %s2108 = ssub.s32 256, 256
      %2109 = vsyncadd [#allocation4], %s2108
      %s2111 = sshll.u32 [#allocation11], 4
      %s2112 = int_to_ptr.vmem [resolvable:$true] %s2111
      %2114 = dma.vmem_to_hbm [thread:$0]  %s2112, 256, %s6, [#allocation4]
    $region49: #{tpu_custom_call.1} parent=1 // pred_fallthru
      _
    // Predicated region
    $region50: #{tpu_custom_call.1} parent=1 // pred_check
      _
    $region51: #{tpu_custom_call.1} parent=1 // pred_check_branch
      %2116 = sbr.rel (0) target = $region53
    $region52: #{tpu_custom_call.1} parent=1 // pred_region
      %2117 = dma.done [#allocation4], 256
    $region53: #{tpu_custom_call.1} parent=1 // pred_fallthru
      _
    %2118 = vsyncpa [#allocation3], 1
    %2119 = vsyncpa [#allocation6], 1
    %2120 = vsyncpa [#allocation9], 1
    %2121 = vsyncpa [#allocation4], 1

</llo_original>
